<compile_context>
chip_gen: v5e
topology: v5e:2x2
jax: 0.10.0
libtpu: 0.0.40
codegen_flags: <defaults>
</compile_context>

<pallas_src>
import math

import jax
import jax.numpy as jnp
from jax.experimental import pallas as pl
from jax.experimental.pallas import tpu as pltpu

# ----------------------------- configuration --------------------------------
D_MODEL = 32
D_STATE = 16
D_CONV = 4
EXPAND = 2
D_INNER = EXPAND * D_MODEL                 # 64
DT_RANK = math.ceil(D_MODEL / 16)          # 2
EPS = 1e-6
BATCH = 2
SEQ = 8
BL = BATCH * SEQ                           # 16 rows, batch folded onto sublanes
LANEW = BATCH * D_INNER                    # 128: batch folded onto lanes for the scan

# rows inside the packed (PACK_ROWS, 128) f32 parameter block
ROW_A = 0                                  # rows [0, D_STATE) : -exp(A_log), tiled x2 over lanes
ROW_CONVW = D_STATE                        # rows [16, 16+D_CONV) : conv weight
ROW_CONVB = ROW_CONVW + D_CONV             # 20 : conv bias
ROW_DTB = ROW_CONVB + 1                    # 21 : dt_proj bias
ROW_DVEC = ROW_DTB + 1                     # 22 : D (skip) vector
ROW_N1W = ROW_DVEC + 1                     # 23 : norm1 weight
ROW_N2W = ROW_N1W + 1                      # 24 : norm2 weight
ROW_MLPB2 = ROW_N2W + 1                    # 25 : mlp b2
ROW_MLPB1 = ROW_MLPB2 + 1                  # 26 : mlp b1 (full 128 lanes)
PACK_ROWS = ROW_MLPB1 + 1                  # 27


# ------------------------------ kernel helpers -------------------------------
def _silu(v):
    # sigmoid via EUP reciprocal (approx is well inside the test tolerance)
    return v * pl.reciprocal(1.0 + jnp.exp(-v), approx=True)


def _softplus(v):
    return jnp.maximum(v, 0.0) + jnp.log(1.0 + jnp.exp(-jnp.abs(v)))


def _gelu_tanh(v):
    # tanh-approximation GELU (EUP tanh); diff vs exact-erf GELU is negligible here.
    c = 0.7978845608028654  # sqrt(2/pi)
    return 0.5 * v * (1.0 + jnp.tanh(c * (v + 0.044715 * v * v * v)))


# --------------------------------- kernel ------------------------------------
def mamba_block_kernel(x_ref, w_in, w_xp, w_out, w1, w2, pack, shiftm, spread, o_ref):
    f32 = jnp.float32
    bf16 = jnp.bfloat16

    pk = pack[...]                                           # (27, 128) f32
    A_lane = pk[ROW_A:ROW_A + D_STATE, :]                    # (N, B*Din), batch pre-tiled on lanes
    conv_w = pk[ROW_CONVW:ROW_CONVW + D_CONV, :D_INNER]      # (K, Din)
    conv_b = pk[ROW_CONVB:ROW_CONVB + 1, :D_INNER]           # (1, Din)
    dt_b = pk[ROW_DTB:ROW_DTB + 1, :D_INNER]
    d_vec = pk[ROW_DVEC:ROW_DVEC + 1, :D_INNER]
    n1w = pk[ROW_N1W:ROW_N1W + 1, :D_MODEL]
    n2w = pk[ROW_N2W:ROW_N2W + 1, :D_MODEL]
    b2 = pk[ROW_MLPB2:ROW_MLPB2 + 1, :D_MODEL]
    b1 = pk[ROW_MLPB1:ROW_MLPB1 + 1, :]

    x = x_ref[...].astype(f32)                               # (B*L, D)

    # ---- RMSNorm 1 (matches the torch code: rms = sqrt(||x||^2 + eps)) ------
    inv1 = jax.lax.rsqrt(jnp.sum(x * x, axis=-1, keepdims=True) + EPS)
    xn = n1w * x * inv1

    # ---- fused in_proj (one 128-lane matmul), split into x / z branches -----
    proj = jnp.dot(xn.astype(bf16), w_in[...],
                   preferred_element_type=f32)               # (B*L, 2*Din)
    xin = proj[:, :D_INNER]
    z = proj[:, D_INNER:]

    # ---- depthwise causal conv1d + SiLU --------------------------------------
    # One bf16 MXU matmul with the three stacked (batch-masked) one-hot shift
    # matrices; per-shift results are aligned 16-row slices of the output.
    sh = jnp.dot(shiftm[...], xin.astype(bf16),
                 preferred_element_type=f32)                 # (3*BL, Din)
    acc = xin * conv_w[D_CONV - 1:D_CONV, :]                 # s = 0 term
    for s in range(1, D_CONV):
        acc = acc + sh[(s - 1) * BL:s * BL, :] * conv_w[D_CONV - 1 - s:D_CONV - s, :]
    xc = _silu(acc + conv_b)                                 # (B*L, Din)

    # ---- fused x_proj (dt_proj folded offline) -> dt | [B C] -----------------
    xp = jnp.dot(xc.astype(bf16), w_xp[...],
                 preferred_element_type=f32)                 # (B*L, Din + 2N)
    dt = _softplus(xp[:, :D_INNER] + dt_b)                   # (B*L, Din)
    G = dt * xc                                              # dt * u

    # ---- lane-dense (batch on lanes) tensors for the scan --------------------
    dtL = jnp.concatenate([dt[0:SEQ, :], dt[SEQ:BL, :]], axis=1)   # (SEQ, B*Din)
    GL = jnp.concatenate([G[0:SEQ, :], G[SEQ:BL, :]], axis=1)      # (SEQ, B*Din)

    # lane-broadcast all B/C columns for every (b, t) with ONE bf16 one-hot matmul
    bct = xp[:, D_INNER:].T                                  # (2N, B*L), one small transpose
    bc_sp = jnp.dot(bct.astype(bf16), spread[...],
                    preferred_element_type=f32)              # (2N, SEQ * B*Din)

    # ---- hoist exp(A*dt), dBu and C out of the recurrence --------------------
    dA_list, dBu_list, c_list = [], [], []
    for t in range(SEQ):
        dA_list.append(jnp.exp(A_lane * dtL[t:t + 1, :]))    # (N, B*Din)
        blk = bc_sp[:, t * LANEW:(t + 1) * LANEW]            # (2N, B*Din), aligned lane slice
        dBu_list.append(blk[:D_STATE, :] * GL[t:t + 1, :])   # B_t * dt_t * u_t
        c_list.append(blk[D_STATE:, :])                      # C_t broadcast over channels

    # ---- serial recurrence: 8 fused multiply-adds on (16,128) vregs ----------
    # TODO(synk): could be shortened to a 3-level associative (Blelloch) scan if the
    # remaining 8-step chain still dominates the trace.
    h = jnp.zeros((D_STATE, LANEW), f32)
    h_list = []
    for t in range(SEQ):
        h = dA_list[t] * h + dBu_list[t]
        h_list.append(h)

    # ---- C . h contraction pulled out of the serial chain --------------------
    y_rows = [jnp.sum(c_list[t] * h_list[t], axis=0, keepdims=True)
              for t in range(SEQ)]                           # SEQ x (1, B*Din)
    y_lane = jnp.concatenate(y_rows, axis=0)                 # (SEQ, B*Din)
    y = jnp.concatenate([y_lane[:, :D_INNER], y_lane[:, D_INNER:]],
                        axis=0)                              # back to (B*L, Din) row layout

    y = y + xc * d_vec                                       # skip term D * u
    y = y * _silu(z)                                         # gating
    m_out = jnp.dot(y.astype(bf16), w_out[...],
                    preferred_element_type=f32)              # (B*L, D)
    x2 = x + m_out                                           # residual 1

    # ---- RMSNorm 2 + MLP (Linear -> GELU -> Linear) + residual ---------------
    inv2 = jax.lax.rsqrt(jnp.sum(x2 * x2, axis=-1, keepdims=True) + EPS)
    x2n = n2w * x2 * inv2
    h1 = _gelu_tanh(jnp.dot(x2n.astype(bf16), w1[...],
                            preferred_element_type=f32) + b1)
    h2 = jnp.dot(h1.astype(bf16), w2[...], preferred_element_type=f32) + b2

    # 32-lane masked store kept: per the review it is off the critical path at this size.
    o_ref[...] = (x2 + h2).astype(o_ref.dtype)


# --------------------------------- wrapper -----------------------------------
def mamba_block(x, params):
    B, L, D = x.shape
    assert (B, L, D) == (BATCH, SEQ, D_MODEL)
    f32, bf16 = jnp.float32, jnp.bfloat16

    # fused / bf16 matmul weights (prepared once, outside the kernel)
    w_in = jnp.concatenate(
        [params["in_proj_wx"], params["in_proj_wz"]], axis=1).astype(bf16)     # (D, 2Din)
    w_dt_eff = params["x_proj_wdt"] @ params["dt_proj_w"]                      # (Din, Din)
    w_xp = jnp.concatenate(
        [w_dt_eff, params["x_proj_wB"], params["x_proj_wC"]],
        axis=1).astype(bf16)                                                   # (Din, Din+2N)
    w_out = params["out_proj_w"].astype(bf16)                                  # (Din, D)
    w1 = params["mlp_w1"].astype(bf16)                                         # (D, 4D)
    w2 = params["mlp_w2"].astype(bf16)                                         # (4D, D)

    # pack all small f32 tensors into one (27, 128) block
    pack = jnp.zeros((PACK_ROWS, 128), f32)
    pack = pack.at[ROW_A:ROW_A + D_STATE, :].set(
        jnp.tile(-jnp.exp(params["A_logT"]), (1, BATCH)))    # pre-tiled over batch lanes
    pack = pack.at[ROW_CONVW:ROW_CONVW + D_CONV, :D_INNER].set(params["conv_w"])
    pack = pack.at[ROW_CONVB, :D_INNER].set(params["conv_b"])
    pack = pack.at[ROW_DTB, :D_INNER].set(params["dt_proj_b"])
    pack = pack.at[ROW_DVEC, :D_INNER].set(params["D"])
    pack = pack.at[ROW_N1W, :D_MODEL].set(params["norm1_w"])
    pack = pack.at[ROW_N2W, :D_MODEL].set(params["norm2_w"])
    pack = pack.at[ROW_MLPB2, :D_MODEL].set(params["mlp_b2"])
    pack = pack.at[ROW_MLPB1, :4 * D_MODEL].set(params["mlp_b1"])

    # stacked causal shift matrices (batch boundary baked in); one-hots are exact in bf16
    ii = jnp.arange(BL)[:, None]
    jj = jnp.arange(BL)[None, :]
    shiftm = jnp.concatenate(
        [((jj == ii - s) & ((ii % SEQ) >= s)) for s in range(1, D_CONV)],
        axis=0).astype(bf16)                                                   # (3*BL, BL)

    # one-hot "spread" matrix: lane-broadcasts every B/C column for every (b, t)
    # in a single MXU matmul inside the kernel.  col = t*128 + b*64 + c.
    col = jnp.arange(SEQ * LANEW)
    t_col = col // LANEW
    b_col = (col % LANEW) // D_INNER
    r = jnp.arange(BL)                                       # r = b*SEQ + t
    spread = (((r % SEQ)[:, None] == t_col[None, :]) &
              ((r // SEQ)[:, None] == b_col[None, :])).astype(bf16)            # (BL, SEQ*128)

    x_flat = x.reshape(BL, D)                      # batch folded onto sublanes
    args = (x_flat, w_in, w_xp, w_out, w1, w2, pack, shiftm, spread)

    out_flat = pl.pallas_call(
        mamba_block_kernel,
        out_shape=jax.ShapeDtypeStruct((BL, D), x.dtype),
        grid=(1,),                                 # single step: whole problem fits VMEM
        in_specs=[pl.BlockSpec(a.shape, lambda i: (0, 0)) for a in args],
        out_specs=pl.BlockSpec((BL, D), lambda i: (0, 0)),
        compiler_params=pltpu.CompilerParams(dimension_semantics=("arbitrary",)),
    )(*args)
    return out_flat.reshape(B, L, D)


# ------------------------- deterministic parameters --------------------------
def init_params(key):
    ks = jax.random.split(key, 9)

    def w(k, shape, scale=0.02):
        return scale * jax.random.normal(k, shape, jnp.float32)

    in_proj = w(ks[0], (D_MODEL, 2 * D_INNER))
    x_proj = w(ks[1], (D_INNER, DT_RANK + 2 * D_STATE))
    a_init = jnp.broadcast_to(
        jnp.arange(1, D_STATE + 1, dtype=jnp.float32)[:, None], (D_STATE, D_INNER))
    return dict(
        norm1_w=jnp.ones((D_MODEL,), jnp.float32),
        in_proj_wx=in_proj[:, :D_INNER],
        in_proj_wz=in_proj[:, D_INNER:],
        conv_w=w(ks[2], (D_CONV, D_INNER), 0.1),
        conv_b=w(ks[3], (D_INNER,), 0.1),
        x_proj_wdt=x_proj[:, :DT_RANK],
        x_proj_wB=x_proj[:, DT_RANK:DT_RANK + D_STATE],
        x_proj_wC=x_proj[:, DT_RANK + D_STATE:],
        dt_proj_w=w(ks[4], (DT_RANK, D_INNER), 0.1),
        dt_proj_b=w(ks[5], (D_INNER,), 0.1),
        A_logT=jnp.log(a_init),                       # (N, Din), S4D-real style init
        D=jnp.ones((D_INNER,), jnp.float32),
        out_proj_w=w(ks[6], (D_INNER, D_MODEL)),
        norm2_w=jnp.ones((D_MODEL,), jnp.float32),
        mlp_w1=w(ks[7], (D_MODEL, 4 * D_MODEL)),
        mlp_b1=jnp.zeros((4 * D_MODEL,), jnp.float32),
        mlp_w2=w(ks[8], (4 * D_MODEL, D_MODEL)),
        mlp_b2=jnp.zeros((D_MODEL,), jnp.float32),
    )


# --------------------------- pure-JAX reference -------------------------------
def reference(x, p):
    def rmsnorm(v, wt):
        rms = jnp.sqrt(jnp.sum(v * v, -1, keepdims=True) + EPS)
        return wt * v / rms

    xn = rmsnorm(x, p["norm1_w"])
    xin = xn @ p["in_proj_wx"]
    z = xn @ p["in_proj_wz"]
    xpad = jnp.pad(xin, ((0, 0), (D_CONV - 1, 0), (0, 0)))
    xc = sum(xpad[:, k:k + SEQ, :] * p["conv_w"][k][None, None, :]
             for k in range(D_CONV)) + p["conv_b"]
    xc = xc * jax.nn.sigmoid(xc)
    dt = jax.nn.softplus((xc @ p["x_proj_wdt"]) @ p["dt_proj_w"] + p["dt_proj_b"])
    Bm = xc @ p["x_proj_wB"]
    Cm = xc @ p["x_proj_wC"]
    A = -jnp.exp(p["A_logT"].T)                              # (Din, N)
    h = jnp.zeros((x.shape[0], D_INNER, D_STATE), jnp.float32)
    ys = []
    for t in range(SEQ):
        dA = jnp.exp(dt[:, t, :, None] * A)
        dBu = dt[:, t, :, None] * Bm[:, t, None, :] * xc[:, t, :, None]
        h = dA * h + dBu
        ys.append(jnp.sum(h * Cm[:, t, None, :], -1))
    y = jnp.stack(ys, axis=1) + xc * p["D"]
    y = y * (z * jax.nn.sigmoid(z))
    x2 = x + y @ p["out_proj_w"]
    x2n = rmsnorm(x2, p["norm2_w"])
    h1 = jax.nn.gelu(x2n @ p["mlp_w1"] + p["mlp_b1"], approximate=False)
    return x2 + h1 @ p["mlp_w2"] + p["mlp_b2"]


# ----------------------------------- main -------------------------------------
if __name__ == "__main__":
    key = jax.random.PRNGKey(0)
    kx, kp = jax.random.split(key)
    x = jax.random.normal(kx, (BATCH, SEQ, D_MODEL), jnp.float32)
    params = init_params(kp)

    out = mamba_block(x, params)
    out = jax.block_until_ready(out)

    ref = reference(x, params)
    assert out.shape == (BATCH, SEQ, D_MODEL)
    assert bool(jnp.allclose(out, ref, atol=2e-2, rtol=2e-2)), "mismatch vs reference"

    print("KERNEL_OK")
</pallas_src>

<mosaic_0001>
module attributes {stable_mosaic.version = 11 : i64} {
  func.func @mamba_block_kernel(%arg0: i32, %arg1: memref<16x32xf32, #tpu.memory_space<vmem>>, %arg2: memref<32x128xbf16, #tpu.memory_space<vmem>>, %arg3: memref<64x96xbf16, #tpu.memory_space<vmem>>, %arg4: memref<64x32xbf16, #tpu.memory_space<vmem>>, %arg5: memref<32x128xbf16, #tpu.memory_space<vmem>>, %arg6: memref<128x32xbf16, #tpu.memory_space<vmem>>, %arg7: memref<27x128xf32, #tpu.memory_space<vmem>>, %arg8: memref<48x16xbf16, #tpu.memory_space<vmem>>, %arg9: memref<16x1024xbf16, #tpu.memory_space<vmem>>, %arg10: memref<16x32xf32, #tpu.memory_space<vmem>>) attributes {dimension_semantics = [#tpu.dimension_semantics<arbitrary>], iteration_bounds = array<i64: 1>, scalar_prefetch = 0 : i64, scratch_operands = 0 : i64, tpu.core_type = #tpu.core_type<tc>, window_params = [{pipeline_mode = #tpu.pipeline_mode<synchronous>, transform_indices = @transform_0, window_bounds = array<i64: 16, 32>}, {pipeline_mode = #tpu.pipeline_mode<synchronous>, transform_indices = @transform_1, window_bounds = array<i64: 32, 128>}, {pipeline_mode = #tpu.pipeline_mode<synchronous>, transform_indices = @transform_2, window_bounds = array<i64: 64, 96>}, {pipeline_mode = #tpu.pipeline_mode<synchronous>, transform_indices = @transform_3, window_bounds = array<i64: 64, 32>}, {pipeline_mode = #tpu.pipeline_mode<synchronous>, transform_indices = @transform_4, window_bounds = array<i64: 32, 128>}, {pipeline_mode = #tpu.pipeline_mode<synchronous>, transform_indices = @transform_5, window_bounds = array<i64: 128, 32>}, {pipeline_mode = #tpu.pipeline_mode<synchronous>, transform_indices = @transform_6, window_bounds = array<i64: 27, 128>}, {pipeline_mode = #tpu.pipeline_mode<synchronous>, transform_indices = @transform_7, window_bounds = array<i64: 48, 16>}, {pipeline_mode = #tpu.pipeline_mode<synchronous>, transform_indices = @transform_8, window_bounds = array<i64: 16, 1024>}, {pipeline_mode = #tpu.pipeline_mode<synchronous>, transform_indices = @transform_9, window_bounds = array<i64: 16, 32>}]} {
    %c0 = arith.constant 0 : index
    %c0_0 = arith.constant 0 : index
    %0 = vector.load %arg7[%c0, %c0_0] : memref<27x128xf32, #tpu.memory_space<vmem>>, vector<27x128xf32>
    %1 = vector.extract_strided_slice %0 {offsets = [0, 0], sizes = [16, 128], strides = [1, 1]} : vector<27x128xf32> to vector<16x128xf32>
    %2 = vector.extract_strided_slice %0 {offsets = [16, 0], sizes = [4, 64], strides = [1, 1]} : vector<27x128xf32> to vector<4x64xf32>
    %3 = vector.extract_strided_slice %0 {offsets = [20, 0], sizes = [1, 64], strides = [1, 1]} : vector<27x128xf32> to vector<1x64xf32>
    %4 = vector.extract_strided_slice %0 {offsets = [21, 0], sizes = [1, 64], strides = [1, 1]} : vector<27x128xf32> to vector<1x64xf32>
    %5 = vector.extract_strided_slice %0 {offsets = [22, 0], sizes = [1, 64], strides = [1, 1]} : vector<27x128xf32> to vector<1x64xf32>
    %6 = vector.extract_strided_slice %0 {offsets = [23, 0], sizes = [1, 32], strides = [1, 1]} : vector<27x128xf32> to vector<1x32xf32>
    %7 = vector.extract_strided_slice %0 {offsets = [24, 0], sizes = [1, 32], strides = [1, 1]} : vector<27x128xf32> to vector<1x32xf32>
    %8 = vector.extract_strided_slice %0 {offsets = [25, 0], sizes = [1, 32], strides = [1, 1]} : vector<27x128xf32> to vector<1x32xf32>
    %9 = vector.extract_strided_slice %0 {offsets = [26, 0], sizes = [1, 128], strides = [1, 1]} : vector<27x128xf32> to vector<1x128xf32>
    %c0_1 = arith.constant 0 : index
    %c0_2 = arith.constant 0 : index
    %10 = vector.load %arg1[%c0_1, %c0_2] : memref<16x32xf32, #tpu.memory_space<vmem>>, vector<16x32xf32>
    %11 = arith.mulf %10, %10 : vector<16x32xf32>
    %cst = arith.constant dense<0.000000e+00> : vector<16xf32>
    %12 = vector.multi_reduction <add>, %11, %cst [1] : vector<16x32xf32> to vector<16xf32>
    %13 = vector.shape_cast %12 : vector<16xf32> to vector<16x1xf32>
    %cst_3 = arith.constant 9.99999997E-7 : f32
    %14 = vector.broadcast %cst_3 : f32 to vector<16x1xf32>
    %15 = arith.addf %13, %14 : vector<16x1xf32>
    %16 = math.rsqrt %15 : vector<16x1xf32>
    %17 = vector.broadcast %6 : vector<1x32xf32> to vector<16x32xf32>
    %18 = arith.mulf %17, %10 : vector<16x32xf32>
    %19 = vector.broadcast %16 : vector<16x1xf32> to vector<16x32xf32>
    %20 = arith.mulf %18, %19 : vector<16x32xf32>
    %21 = arith.truncf %20 : vector<16x32xf32> to vector<16x32xbf16>
    %c0_4 = arith.constant 0 : index
    %c0_5 = arith.constant 0 : index
    %22 = vector.load %arg2[%c0_4, %c0_5] : memref<32x128xbf16, #tpu.memory_space<vmem>>, vector<32x128xbf16>
    %cst_6 = arith.constant dense<0.000000e+00> : vector<16x128xf32>
    %23 = tpu.matmul %21, %22, %cst_6 {dimension_numbers = #tpu.dot_dimension_numbers<[1], [0], [0], [1], [0, 0, 1, 1], [], []>} : vector<16x32xbf16>, vector<32x128xbf16>, vector<16x128xf32> -> vector<16x128xf32>
    %24 = vector.extract_strided_slice %23 {offsets = [0, 0], sizes = [16, 64], strides = [1, 1]} : vector<16x128xf32> to vector<16x64xf32>
    %25 = vector.extract_strided_slice %23 {offsets = [0, 64], sizes = [16, 64], strides = [1, 1]} : vector<16x128xf32> to vector<16x64xf32>
    %c0_7 = arith.constant 0 : index
    %c0_8 = arith.constant 0 : index
    %26 = vector.load %arg8[%c0_7, %c0_8] : memref<48x16xbf16, #tpu.memory_space<vmem>>, vector<48x16xbf16>
    %27 = arith.truncf %24 : vector<16x64xf32> to vector<16x64xbf16>
    %cst_9 = arith.constant dense<0.000000e+00> : vector<48x64xf32>
    %28 = tpu.matmul %26, %27, %cst_9 {dimension_numbers = #tpu.dot_dimension_numbers<[1], [0], [0], [1], [0, 0, 1, 1], [], []>} : vector<48x16xbf16>, vector<16x64xbf16>, vector<48x64xf32> -> vector<48x64xf32>
    %29 = vector.extract_strided_slice %2 {offsets = [3, 0], sizes = [1, 64], strides = [1, 1]} : vector<4x64xf32> to vector<1x64xf32>
    %30 = vector.broadcast %29 : vector<1x64xf32> to vector<16x64xf32>
    %31 = arith.mulf %24, %30 : vector<16x64xf32>
    %32 = vector.extract_strided_slice %28 {offsets = [0, 0], sizes = [16, 64], strides = [1, 1]} : vector<48x64xf32> to vector<16x64xf32>
    %33 = vector.extract_strided_slice %2 {offsets = [2, 0], sizes = [1, 64], strides = [1, 1]} : vector<4x64xf32> to vector<1x64xf32>
    %34 = vector.broadcast %33 : vector<1x64xf32> to vector<16x64xf32>
    %35 = arith.mulf %32, %34 : vector<16x64xf32>
    %36 = arith.addf %31, %35 : vector<16x64xf32>
    %37 = vector.extract_strided_slice %28 {offsets = [16, 0], sizes = [16, 64], strides = [1, 1]} : vector<48x64xf32> to vector<16x64xf32>
    %38 = vector.extract_strided_slice %2 {offsets = [1, 0], sizes = [1, 64], strides = [1, 1]} : vector<4x64xf32> to vector<1x64xf32>
    %39 = vector.broadcast %38 : vector<1x64xf32> to vector<16x64xf32>
    %40 = arith.mulf %37, %39 : vector<16x64xf32>
    %41 = arith.addf %36, %40 : vector<16x64xf32>
    %42 = vector.extract_strided_slice %28 {offsets = [32, 0], sizes = [16, 64], strides = [1, 1]} : vector<48x64xf32> to vector<16x64xf32>
    %43 = vector.extract_strided_slice %2 {offsets = [0, 0], sizes = [1, 64], strides = [1, 1]} : vector<4x64xf32> to vector<1x64xf32>
    %44 = vector.broadcast %43 : vector<1x64xf32> to vector<16x64xf32>
    %45 = arith.mulf %42, %44 : vector<16x64xf32>
    %46 = arith.addf %41, %45 : vector<16x64xf32>
    %47 = vector.broadcast %3 : vector<1x64xf32> to vector<16x64xf32>
    %48 = arith.addf %46, %47 : vector<16x64xf32>
    %cst_10 = arith.constant 0.000000e+00 : f32
    %49 = vector.broadcast %cst_10 : f32 to vector<16x64xf32>
    %50 = arith.subf %49, %48 : vector<16x64xf32>
    %51 = math.exp %50 : vector<16x64xf32>
    %cst_11 = arith.constant 1.000000e+00 : f32
    %52 = vector.broadcast %cst_11 : f32 to vector<16x64xf32>
    %53 = arith.addf %52, %51 : vector<16x64xf32>
    %54 = tpu.reciprocal %53 {approx = true} : vector<16x64xf32> -> vector<16x64xf32>
    %55 = arith.mulf %48, %54 : vector<16x64xf32>
    %56 = arith.truncf %55 : vector<16x64xf32> to vector<16x64xbf16>
    %c0_12 = arith.constant 0 : index
    %c0_13 = arith.constant 0 : index
    %57 = vector.load %arg3[%c0_12, %c0_13] : memref<64x96xbf16, #tpu.memory_space<vmem>>, vector<64x96xbf16>
    %cst_14 = arith.constant dense<0.000000e+00> : vector<16x96xf32>
    %58 = tpu.matmul %56, %57, %cst_14 {dimension_numbers = #tpu.dot_dimension_numbers<[1], [0], [0], [1], [0, 0, 1, 1], [], []>} : vector<16x64xbf16>, vector<64x96xbf16>, vector<16x96xf32> -> vector<16x96xf32>
    %59 = vector.extract_strided_slice %58 {offsets = [0, 0], sizes = [16, 64], strides = [1, 1]} : vector<16x96xf32> to vector<16x64xf32>
    %60 = vector.broadcast %4 : vector<1x64xf32> to vector<16x64xf32>
    %61 = arith.addf %59, %60 : vector<16x64xf32>
    %cst_15 = arith.constant 0.000000e+00 : f32
    %62 = vector.broadcast %cst_15 : f32 to vector<16x64xf32>
    %63 = arith.maximumf %61, %62 : vector<16x64xf32>
    %64 = math.absf %61 : vector<16x64xf32>
    %cst_16 = arith.constant 0.000000e+00 : f32
    %65 = vector.broadcast %cst_16 : f32 to vector<16x64xf32>
    %66 = arith.subf %65, %64 : vector<16x64xf32>
    %67 = math.exp %66 : vector<16x64xf32>
    %cst_17 = arith.constant 1.000000e+00 : f32
    %68 = vector.broadcast %cst_17 : f32 to vector<16x64xf32>
    %69 = arith.addf %68, %67 : vector<16x64xf32>
    %70 = math.log %69 : vector<16x64xf32>
    %71 = arith.addf %63, %70 : vector<16x64xf32>
    %72 = arith.mulf %71, %55 : vector<16x64xf32>
    %73 = vector.extract_strided_slice %71 {offsets = [0, 0], sizes = [8, 64], strides = [1, 1]} : vector<16x64xf32> to vector<8x64xf32>
    %74 = vector.extract_strided_slice %71 {offsets = [8, 0], sizes = [8, 64], strides = [1, 1]} : vector<16x64xf32> to vector<8x64xf32>
    %75 = tpu.concatenate %73, %74 in 1 : vector<8x64xf32>, vector<8x64xf32> -> vector<8x128xf32>
    %76 = vector.extract_strided_slice %72 {offsets = [0, 0], sizes = [8, 64], strides = [1, 1]} : vector<16x64xf32> to vector<8x64xf32>
    %77 = vector.extract_strided_slice %72 {offsets = [8, 0], sizes = [8, 64], strides = [1, 1]} : vector<16x64xf32> to vector<8x64xf32>
    %78 = tpu.concatenate %76, %77 in 1 : vector<8x64xf32>, vector<8x64xf32> -> vector<8x128xf32>
    %79 = vector.extract_strided_slice %58 {offsets = [0, 64], sizes = [16, 32], strides = [1, 1]} : vector<16x96xf32> to vector<16x32xf32>
    %80 = tpu.transpose %79, [1, 0] : vector<16x32xf32> -> vector<32x16xf32>
    %81 = arith.truncf %80 : vector<32x16xf32> to vector<32x16xbf16>
    %c0_18 = arith.constant 0 : index
    %c0_19 = arith.constant 0 : index
    %82 = vector.load %arg9[%c0_18, %c0_19] : memref<16x1024xbf16, #tpu.memory_space<vmem>>, vector<16x1024xbf16>
    %cst_20 = arith.constant dense<0.000000e+00> : vector<32x1024xf32>
    %83 = tpu.matmul %81, %82, %cst_20 {dimension_numbers = #tpu.dot_dimension_numbers<[1], [0], [0], [1], [0, 0, 1, 1], [], []>} : vector<32x16xbf16>, vector<16x1024xbf16>, vector<32x1024xf32> -> vector<32x1024xf32>
    %84 = vector.extract_strided_slice %75 {offsets = [0, 0], sizes = [1, 128], strides = [1, 1]} : vector<8x128xf32> to vector<1x128xf32>
    %85 = vector.broadcast %84 : vector<1x128xf32> to vector<16x128xf32>
    %86 = arith.mulf %1, %85 : vector<16x128xf32>
    %87 = math.exp %86 : vector<16x128xf32>
    %88 = vector.extract_strided_slice %83 {offsets = [0, 0], sizes = [32, 128], strides = [1, 1]} : vector<32x1024xf32> to vector<32x128xf32>
    %89 = vector.extract_strided_slice %88 {offsets = [0, 0], sizes = [16, 128], strides = [1, 1]} : vector<32x128xf32> to vector<16x128xf32>
    %90 = vector.extract_strided_slice %78 {offsets = [0, 0], sizes = [1, 128], strides = [1, 1]} : vector<8x128xf32> to vector<1x128xf32>
    %91 = vector.broadcast %90 : vector<1x128xf32> to vector<16x128xf32>
    %92 = arith.mulf %89, %91 : vector<16x128xf32>
    %93 = vector.extract_strided_slice %88 {offsets = [16, 0], sizes = [16, 128], strides = [1, 1]} : vector<32x128xf32> to vector<16x128xf32>
    %94 = vector.extract_strided_slice %75 {offsets = [1, 0], sizes = [1, 128], strides = [1, 1]} : vector<8x128xf32> to vector<1x128xf32>
    %95 = vector.broadcast %94 : vector<1x128xf32> to vector<16x128xf32>
    %96 = arith.mulf %1, %95 : vector<16x128xf32>
    %97 = math.exp %96 : vector<16x128xf32>
    %98 = vector.extract_strided_slice %83 {offsets = [0, 128], sizes = [32, 128], strides = [1, 1]} : vector<32x1024xf32> to vector<32x128xf32>
    %99 = vector.extract_strided_slice %98 {offsets = [0, 0], sizes = [16, 128], strides = [1, 1]} : vector<32x128xf32> to vector<16x128xf32>
    %100 = vector.extract_strided_slice %78 {offsets = [1, 0], sizes = [1, 128], strides = [1, 1]} : vector<8x128xf32> to vector<1x128xf32>
    %101 = vector.broadcast %100 : vector<1x128xf32> to vector<16x128xf32>
    %102 = arith.mulf %99, %101 : vector<16x128xf32>
    %103 = vector.extract_strided_slice %98 {offsets = [16, 0], sizes = [16, 128], strides = [1, 1]} : vector<32x128xf32> to vector<16x128xf32>
    %104 = vector.extract_strided_slice %75 {offsets = [2, 0], sizes = [1, 128], strides = [1, 1]} : vector<8x128xf32> to vector<1x128xf32>
    %105 = vector.broadcast %104 : vector<1x128xf32> to vector<16x128xf32>
    %106 = arith.mulf %1, %105 : vector<16x128xf32>
    %107 = math.exp %106 : vector<16x128xf32>
    %108 = vector.extract_strided_slice %83 {offsets = [0, 256], sizes = [32, 128], strides = [1, 1]} : vector<32x1024xf32> to vector<32x128xf32>
    %109 = vector.extract_strided_slice %108 {offsets = [0, 0], sizes = [16, 128], strides = [1, 1]} : vector<32x128xf32> to vector<16x128xf32>
    %110 = vector.extract_strided_slice %78 {offsets = [2, 0], sizes = [1, 128], strides = [1, 1]} : vector<8x128xf32> to vector<1x128xf32>
    %111 = vector.broadcast %110 : vector<1x128xf32> to vector<16x128xf32>
    %112 = arith.mulf %109, %111 : vector<16x128xf32>
    %113 = vector.extract_strided_slice %108 {offsets = [16, 0], sizes = [16, 128], strides = [1, 1]} : vector<32x128xf32> to vector<16x128xf32>
    %114 = vector.extract_strided_slice %75 {offsets = [3, 0], sizes = [1, 128], strides = [1, 1]} : vector<8x128xf32> to vector<1x128xf32>
    %115 = vector.broadcast %114 : vector<1x128xf32> to vector<16x128xf32>
    %116 = arith.mulf %1, %115 : vector<16x128xf32>
    %117 = math.exp %116 : vector<16x128xf32>
    %118 = vector.extract_strided_slice %83 {offsets = [0, 384], sizes = [32, 128], strides = [1, 1]} : vector<32x1024xf32> to vector<32x128xf32>
    %119 = vector.extract_strided_slice %118 {offsets = [0, 0], sizes = [16, 128], strides = [1, 1]} : vector<32x128xf32> to vector<16x128xf32>
    %120 = vector.extract_strided_slice %78 {offsets = [3, 0], sizes = [1, 128], strides = [1, 1]} : vector<8x128xf32> to vector<1x128xf32>
    %121 = vector.broadcast %120 : vector<1x128xf32> to vector<16x128xf32>
    %122 = arith.mulf %119, %121 : vector<16x128xf32>
    %123 = vector.extract_strided_slice %118 {offsets = [16, 0], sizes = [16, 128], strides = [1, 1]} : vector<32x128xf32> to vector<16x128xf32>
    %124 = vector.extract_strided_slice %75 {offsets = [4, 0], sizes = [1, 128], strides = [1, 1]} : vector<8x128xf32> to vector<1x128xf32>
    %125 = vector.broadcast %124 : vector<1x128xf32> to vector<16x128xf32>
    %126 = arith.mulf %1, %125 : vector<16x128xf32>
    %127 = math.exp %126 : vector<16x128xf32>
    %128 = vector.extract_strided_slice %83 {offsets = [0, 512], sizes = [32, 128], strides = [1, 1]} : vector<32x1024xf32> to vector<32x128xf32>
    %129 = vector.extract_strided_slice %128 {offsets = [0, 0], sizes = [16, 128], strides = [1, 1]} : vector<32x128xf32> to vector<16x128xf32>
    %130 = vector.extract_strided_slice %78 {offsets = [4, 0], sizes = [1, 128], strides = [1, 1]} : vector<8x128xf32> to vector<1x128xf32>
    %131 = vector.broadcast %130 : vector<1x128xf32> to vector<16x128xf32>
    %132 = arith.mulf %129, %131 : vector<16x128xf32>
    %133 = vector.extract_strided_slice %128 {offsets = [16, 0], sizes = [16, 128], strides = [1, 1]} : vector<32x128xf32> to vector<16x128xf32>
    %134 = vector.extract_strided_slice %75 {offsets = [5, 0], sizes = [1, 128], strides = [1, 1]} : vector<8x128xf32> to vector<1x128xf32>
    %135 = vector.broadcast %134 : vector<1x128xf32> to vector<16x128xf32>
    %136 = arith.mulf %1, %135 : vector<16x128xf32>
    %137 = math.exp %136 : vector<16x128xf32>
    %138 = vector.extract_strided_slice %83 {offsets = [0, 640], sizes = [32, 128], strides = [1, 1]} : vector<32x1024xf32> to vector<32x128xf32>
    %139 = vector.extract_strided_slice %138 {offsets = [0, 0], sizes = [16, 128], strides = [1, 1]} : vector<32x128xf32> to vector<16x128xf32>
    %140 = vector.extract_strided_slice %78 {offsets = [5, 0], sizes = [1, 128], strides = [1, 1]} : vector<8x128xf32> to vector<1x128xf32>
    %141 = vector.broadcast %140 : vector<1x128xf32> to vector<16x128xf32>
    %142 = arith.mulf %139, %141 : vector<16x128xf32>
    %143 = vector.extract_strided_slice %138 {offsets = [16, 0], sizes = [16, 128], strides = [1, 1]} : vector<32x128xf32> to vector<16x128xf32>
    %144 = vector.extract_strided_slice %75 {offsets = [6, 0], sizes = [1, 128], strides = [1, 1]} : vector<8x128xf32> to vector<1x128xf32>
    %145 = vector.broadcast %144 : vector<1x128xf32> to vector<16x128xf32>
    %146 = arith.mulf %1, %145 : vector<16x128xf32>
    %147 = math.exp %146 : vector<16x128xf32>
    %148 = vector.extract_strided_slice %83 {offsets = [0, 768], sizes = [32, 128], strides = [1, 1]} : vector<32x1024xf32> to vector<32x128xf32>
    %149 = vector.extract_strided_slice %148 {offsets = [0, 0], sizes = [16, 128], strides = [1, 1]} : vector<32x128xf32> to vector<16x128xf32>
    %150 = vector.extract_strided_slice %78 {offsets = [6, 0], sizes = [1, 128], strides = [1, 1]} : vector<8x128xf32> to vector<1x128xf32>
    %151 = vector.broadcast %150 : vector<1x128xf32> to vector<16x128xf32>
    %152 = arith.mulf %149, %151 : vector<16x128xf32>
    %153 = vector.extract_strided_slice %148 {offsets = [16, 0], sizes = [16, 128], strides = [1, 1]} : vector<32x128xf32> to vector<16x128xf32>
    %154 = vector.extract_strided_slice %75 {offsets = [7, 0], sizes = [1, 128], strides = [1, 1]} : vector<8x128xf32> to vector<1x128xf32>
    %155 = vector.broadcast %154 : vector<1x128xf32> to vector<16x128xf32>
    %156 = arith.mulf %1, %155 : vector<16x128xf32>
    %157 = math.exp %156 : vector<16x128xf32>
    %158 = vector.extract_strided_slice %83 {offsets = [0, 896], sizes = [32, 128], strides = [1, 1]} : vector<32x1024xf32> to vector<32x128xf32>
    %159 = vector.extract_strided_slice %158 {offsets = [0, 0], sizes = [16, 128], strides = [1, 1]} : vector<32x128xf32> to vector<16x128xf32>
    %160 = vector.extract_strided_slice %78 {offsets = [7, 0], sizes = [1, 128], strides = [1, 1]} : vector<8x128xf32> to vector<1x128xf32>
    %161 = vector.broadcast %160 : vector<1x128xf32> to vector<16x128xf32>
    %162 = arith.mulf %159, %161 : vector<16x128xf32>
    %163 = vector.extract_strided_slice %158 {offsets = [16, 0], sizes = [16, 128], strides = [1, 1]} : vector<32x128xf32> to vector<16x128xf32>
    %cst_21 = arith.constant 0.000000e+00 : f32
    %164 = vector.broadcast %cst_21 : f32 to vector<16x128xf32>
    %165 = arith.mulf %87, %164 : vector<16x128xf32>
    %166 = arith.addf %165, %92 : vector<16x128xf32>
    %167 = arith.mulf %97, %166 : vector<16x128xf32>
    %168 = arith.addf %167, %102 : vector<16x128xf32>
    %169 = arith.mulf %107, %168 : vector<16x128xf32>
    %170 = arith.addf %169, %112 : vector<16x128xf32>
    %171 = arith.mulf %117, %170 : vector<16x128xf32>
    %172 = arith.addf %171, %122 : vector<16x128xf32>
    %173 = arith.mulf %127, %172 : vector<16x128xf32>
    %174 = arith.addf %173, %132 : vector<16x128xf32>
    %175 = arith.mulf %137, %174 : vector<16x128xf32>
    %176 = arith.addf %175, %142 : vector<16x128xf32>
    %177 = arith.mulf %147, %176 : vector<16x128xf32>
    %178 = arith.addf %177, %152 : vector<16x128xf32>
    %179 = arith.mulf %157, %178 : vector<16x128xf32>
    %180 = arith.addf %179, %162 : vector<16x128xf32>
    %181 = arith.mulf %93, %166 : vector<16x128xf32>
    %cst_22 = arith.constant dense<0.000000e+00> : vector<128xf32>
    %182 = vector.multi_reduction <add>, %181, %cst_22 [0] : vector<16x128xf32> to vector<128xf32>
    %183 = vector.shape_cast %182 : vector<128xf32> to vector<1x128xf32>
    %184 = arith.mulf %103, %168 : vector<16x128xf32>
    %cst_23 = arith.constant dense<0.000000e+00> : vector<128xf32>
    %185 = vector.multi_reduction <add>, %184, %cst_23 [0] : vector<16x128xf32> to vector<128xf32>
    %186 = vector.shape_cast %185 : vector<128xf32> to vector<1x128xf32>
    %187 = arith.mulf %113, %170 : vector<16x128xf32>
    %cst_24 = arith.constant dense<0.000000e+00> : vector<128xf32>
    %188 = vector.multi_reduction <add>, %187, %cst_24 [0] : vector<16x128xf32> to vector<128xf32>
    %189 = vector.shape_cast %188 : vector<128xf32> to vector<1x128xf32>
    %190 = arith.mulf %123, %172 : vector<16x128xf32>
    %cst_25 = arith.constant dense<0.000000e+00> : vector<128xf32>
    %191 = vector.multi_reduction <add>, %190, %cst_25 [0] : vector<16x128xf32> to vector<128xf32>
    %192 = vector.shape_cast %191 : vector<128xf32> to vector<1x128xf32>
    %193 = arith.mulf %133, %174 : vector<16x128xf32>
    %cst_26 = arith.constant dense<0.000000e+00> : vector<128xf32>
    %194 = vector.multi_reduction <add>, %193, %cst_26 [0] : vector<16x128xf32> to vector<128xf32>
    %195 = vector.shape_cast %194 : vector<128xf32> to vector<1x128xf32>
    %196 = arith.mulf %143, %176 : vector<16x128xf32>
    %cst_27 = arith.constant dense<0.000000e+00> : vector<128xf32>
    %197 = vector.multi_reduction <add>, %196, %cst_27 [0] : vector<16x128xf32> to vector<128xf32>
    %198 = vector.shape_cast %197 : vector<128xf32> to vector<1x128xf32>
    %199 = arith.mulf %153, %178 : vector<16x128xf32>
    %cst_28 = arith.constant dense<0.000000e+00> : vector<128xf32>
    %200 = vector.multi_reduction <add>, %199, %cst_28 [0] : vector<16x128xf32> to vector<128xf32>
    %201 = vector.shape_cast %200 : vector<128xf32> to vector<1x128xf32>
    %202 = arith.mulf %163, %180 : vector<16x128xf32>
    %cst_29 = arith.constant dense<0.000000e+00> : vector<128xf32>
    %203 = vector.multi_reduction <add>, %202, %cst_29 [0] : vector<16x128xf32> to vector<128xf32>
    %204 = vector.shape_cast %203 : vector<128xf32> to vector<1x128xf32>
    %205 = tpu.concatenate %183, %186, %189, %192, %195, %198, %201, %204 in 0 : vector<1x128xf32>, vector<1x128xf32>, vector<1x128xf32>, vector<1x128xf32>, vector<1x128xf32>, vector<1x128xf32>, vector<1x128xf32>, vector<1x128xf32> -> vector<8x128xf32>
    %206 = vector.extract_strided_slice %205 {offsets = [0, 0], sizes = [8, 64], strides = [1, 1]} : vector<8x128xf32> to vector<8x64xf32>
    %207 = vector.extract_strided_slice %205 {offsets = [0, 64], sizes = [8, 64], strides = [1, 1]} : vector<8x128xf32> to vector<8x64xf32>
    %208 = tpu.concatenate %206, %207 in 0 : vector<8x64xf32>, vector<8x64xf32> -> vector<16x64xf32>
    %209 = vector.broadcast %5 : vector<1x64xf32> to vector<16x64xf32>
    %210 = arith.mulf %55, %209 : vector<16x64xf32>
    %211 = arith.addf %208, %210 : vector<16x64xf32>
    %cst_30 = arith.constant 0.000000e+00 : f32
    %212 = vector.broadcast %cst_30 : f32 to vector<16x64xf32>
    %213 = arith.subf %212, %25 : vector<16x64xf32>
    %214 = math.exp %213 : vector<16x64xf32>
    %cst_31 = arith.constant 1.000000e+00 : f32
    %215 = vector.broadcast %cst_31 : f32 to vector<16x64xf32>
    %216 = arith.addf %215, %214 : vector<16x64xf32>
    %217 = tpu.reciprocal %216 {approx = true} : vector<16x64xf32> -> vector<16x64xf32>
    %218 = arith.mulf %25, %217 : vector<16x64xf32>
    %219 = arith.mulf %211, %218 : vector<16x64xf32>
    %220 = arith.truncf %219 : vector<16x64xf32> to vector<16x64xbf16>
    %c0_32 = arith.constant 0 : index
    %c0_33 = arith.constant 0 : index
    %221 = vector.load %arg4[%c0_32, %c0_33] : memref<64x32xbf16, #tpu.memory_space<vmem>>, vector<64x32xbf16>
    %cst_34 = arith.constant dense<0.000000e+00> : vector<16x32xf32>
    %222 = tpu.matmul %220, %221, %cst_34 {dimension_numbers = #tpu.dot_dimension_numbers<[1], [0], [0], [1], [0, 0, 1, 1], [], []>} : vector<16x64xbf16>, vector<64x32xbf16>, vector<16x32xf32> -> vector<16x32xf32>
    %223 = arith.addf %10, %222 : vector<16x32xf32>
    %224 = arith.mulf %223, %223 : vector<16x32xf32>
    %cst_35 = arith.constant dense<0.000000e+00> : vector<16xf32>
    %225 = vector.multi_reduction <add>, %224, %cst_35 [1] : vector<16x32xf32> to vector<16xf32>
    %226 = vector.shape_cast %225 : vector<16xf32> to vector<16x1xf32>
    %cst_36 = arith.constant 9.99999997E-7 : f32
    %227 = vector.broadcast %cst_36 : f32 to vector<16x1xf32>
    %228 = arith.addf %226, %227 : vector<16x1xf32>
    %229 = math.rsqrt %228 : vector<16x1xf32>
    %230 = vector.broadcast %7 : vector<1x32xf32> to vector<16x32xf32>
    %231 = arith.mulf %230, %223 : vector<16x32xf32>
    %232 = vector.broadcast %229 : vector<16x1xf32> to vector<16x32xf32>
    %233 = arith.mulf %231, %232 : vector<16x32xf32>
    %234 = arith.truncf %233 : vector<16x32xf32> to vector<16x32xbf16>
    %c0_37 = arith.constant 0 : index
    %c0_38 = arith.constant 0 : index
    %235 = vector.load %arg5[%c0_37, %c0_38] : memref<32x128xbf16, #tpu.memory_space<vmem>>, vector<32x128xbf16>
    %cst_39 = arith.constant dense<0.000000e+00> : vector<16x128xf32>
    %236 = tpu.matmul %234, %235, %cst_39 {dimension_numbers = #tpu.dot_dimension_numbers<[1], [0], [0], [1], [0, 0, 1, 1], [], []>} : vector<16x32xbf16>, vector<32x128xbf16>, vector<16x128xf32> -> vector<16x128xf32>
    %237 = vector.broadcast %9 : vector<1x128xf32> to vector<16x128xf32>
    %238 = arith.addf %236, %237 : vector<16x128xf32>
    %cst_40 = arith.constant 5.000000e-01 : f32
    %239 = vector.broadcast %cst_40 : f32 to vector<16x128xf32>
    %240 = arith.mulf %239, %238 : vector<16x128xf32>
    %cst_41 = arith.constant 4.471500e-02 : f32
    %241 = vector.broadcast %cst_41 : f32 to vector<16x128xf32>
    %242 = arith.mulf %241, %238 : vector<16x128xf32>
    %243 = arith.mulf %242, %238 : vector<16x128xf32>
    %244 = arith.mulf %243, %238 : vector<16x128xf32>
    %245 = arith.addf %238, %244 : vector<16x128xf32>
    %cst_42 = arith.constant 0.797884583 : f32
    %246 = vector.broadcast %cst_42 : f32 to vector<16x128xf32>
    %247 = arith.mulf %246, %245 : vector<16x128xf32>
    %248 = math.tanh %247 : vector<16x128xf32>
    %cst_43 = arith.constant 1.000000e+00 : f32
    %249 = vector.broadcast %cst_43 : f32 to vector<16x128xf32>
    %250 = arith.addf %249, %248 : vector<16x128xf32>
    %251 = arith.mulf %240, %250 : vector<16x128xf32>
    %252 = arith.truncf %251 : vector<16x128xf32> to vector<16x128xbf16>
    %c0_44 = arith.constant 0 : index
    %c0_45 = arith.constant 0 : index
    %253 = vector.load %arg6[%c0_44, %c0_45] : memref<128x32xbf16, #tpu.memory_space<vmem>>, vector<128x32xbf16>
    %cst_46 = arith.constant dense<0.000000e+00> : vector<16x32xf32>
    %254 = tpu.matmul %252, %253, %cst_46 {dimension_numbers = #tpu.dot_dimension_numbers<[1], [0], [0], [1], [0, 0, 1, 1], [], []>} : vector<16x128xbf16>, vector<128x32xbf16>, vector<16x32xf32> -> vector<16x32xf32>
    %255 = vector.broadcast %8 : vector<1x32xf32> to vector<16x32xf32>
    %256 = arith.addf %254, %255 : vector<16x32xf32>
    %257 = arith.addf %223, %256 : vector<16x32xf32>
    %c0_47 = arith.constant 0 : index
    %c0_48 = arith.constant 0 : index
    %258 = vector.load %arg10[%c0_47, %c0_48] : memref<16x32xf32, #tpu.memory_space<vmem>>, vector<16x32xf32>
    tpu.vector_store %arg10[%c0_47, %c0_48], %257 {strides = array<i32>} : memref<16x32xf32, #tpu.memory_space<vmem>>, vector<16x32xf32>,
    return
  }
  func.func @transform_0(%arg0: i32) -> (i32, i32) {
    %c0_i32 = arith.constant 0 : i32
    %c0_i32_0 = arith.constant 0 : i32
    %c0_i32_1 = arith.constant 0 : i32
    return %c0_i32, %c0_i32_0 : i32, i32
  }
  func.func @transform_1(%arg0: i32) -> (i32, i32) {
    %c0_i32 = arith.constant 0 : i32
    %c0_i32_0 = arith.constant 0 : i32
    %c0_i32_1 = arith.constant 0 : i32
    return %c0_i32, %c0_i32_0 : i32, i32
  }
  func.func @transform_2(%arg0: i32) -> (i32, i32) {
    %c0_i32 = arith.constant 0 : i32
    %c0_i32_0 = arith.constant 0 : i32
    %c0_i32_1 = arith.constant 0 : i32
    return %c0_i32, %c0_i32_0 : i32, i32
  }
  func.func @transform_3(%arg0: i32) -> (i32, i32) {
    %c0_i32 = arith.constant 0 : i32
    %c0_i32_0 = arith.constant 0 : i32
    %c0_i32_1 = arith.constant 0 : i32
    return %c0_i32, %c0_i32_0 : i32, i32
  }
  func.func @transform_4(%arg0: i32) -> (i32, i32) {
    %c0_i32 = arith.constant 0 : i32
    %c0_i32_0 = arith.constant 0 : i32
    %c0_i32_1 = arith.constant 0 : i32
    return %c0_i32, %c0_i32_0 : i32, i32
  }
  func.func @transform_5(%arg0: i32) -> (i32, i32) {
    %c0_i32 = arith.constant 0 : i32
    %c0_i32_0 = arith.constant 0 : i32
    %c0_i32_1 = arith.constant 0 : i32
    return %c0_i32, %c0_i32_0 : i32, i32
  }
  func.func @transform_6(%arg0: i32) -> (i32, i32) {
    %c0_i32 = arith.constant 0 : i32
    %c0_i32_0 = arith.constant 0 : i32
    %c0_i32_1 = arith.constant 0 : i32
    return %c0_i32, %c0_i32_0 : i32, i32
  }
  func.func @transform_7(%arg0: i32) -> (i32, i32) {
    %c0_i32 = arith.constant 0 : i32
    %c0_i32_0 = arith.constant 0 : i32
    %c0_i32_1 = arith.constant 0 : i32
    return %c0_i32, %c0_i32_0 : i32, i32
  }
  func.func @transform_8(%arg0: i32) -> (i32, i32) {
    %c0_i32 = arith.constant 0 : i32
    %c0_i32_0 = arith.constant 0 : i32
    %c0_i32_1 = arith.constant 0 : i32
    return %c0_i32, %c0_i32_0 : i32, i32
  }
  func.func @transform_9(%arg0: i32) -> (i32, i32) {
    %c0_i32 = arith.constant 0 : i32
    %c0_i32_0 = arith.constant 0 : i32
    %c0_i32_1 = arith.constant 0 : i32
    return %c0_i32, %c0_i32_0 : i32, i32
  }
}

</mosaic_0001>

<llo_original>
// kernel: tpu_custom_call.1
$region0: #{tpu_custom_call.1}
  #allocation0 [shape = 'u32[]', space=smem, size = 0x4, offset = 0x4, fixed_abs, tag = 'smem constant byte address 0x4 - core index']
  #allocation1 [shape = 'u32[72,128]{1,0:T(1,128)}', space=vmem, size = 0x9000, scoped, tag = 'internal scratch']
  %s0 = inlined_call_operand.hbm [shape: f32[16,32], index: 0, kind: input, shape index: {}]
  %s1 = inlined_call_operand.hbm [shape: bf16[32,128], index: 1, kind: input, shape index: {}]
  %s2 = inlined_call_operand.vmem [shape: bf16[64,96], index: 2, kind: input, shape index: {}]
  %s3 = inlined_call_operand.vmem [shape: bf16[64,32], index: 3, kind: input, shape index: {}]
  %s4 = inlined_call_operand.hbm [shape: bf16[32,128], index: 4, kind: input, shape index: {}]
  %s5 = inlined_call_operand.vmem [shape: bf16[128,32], index: 5, kind: input, shape index: {}]
  %s6 = inlined_call_operand.vmem [shape: f32[27,128], index: 6, kind: input, shape index: {}]
  %s7 = inlined_call_operand.vmem [shape: bf16[48,16], index: 7, kind: input, shape index: {}]
  %s8 = inlined_call_operand.vmem [shape: bf16[16,1024], index: 8, kind: input, shape index: {}]
  %s9 = inlined_call_operand.hbm [shape: f32[16,32], index: 9, kind: output, shape index: {}]
  %s10 = sld [smem:[#allocation0]]
  $region58: #{tpu_custom_call.1} parent=0
    _
  %s12 = ssub.s32 1, %s10
  %s13 = scalar_select 0, %s12, %s10
  $region1: #{tpu_custom_call.1} parent=0
    #allocation2 [shape = 'u8[8192]{0}', space=vmem, size = 0x2000, scoped, tag = 'input window, operand 0, single buffered']
    #allocation3 [shape = 's32[1]{0}', space=sflag, size = 0x4, scoped, tag = 'scoped memory for tpu_custom_call.1']
    #allocation4 [shape = 's32[1]{0}', space=sflag, size = 0x4, scoped, tag = 'scoped memory for tpu_custom_call.1']
    #allocation5 [shape = 'u8[8192]{0}', space=vmem, size = 0x2000, scoped, tag = 'input window, operand 1, single buffered']
    #allocation6 [shape = 's32[1]{0}', space=sflag, size = 0x4, scoped, tag = 'scoped memory for tpu_custom_call.1']
    #allocation7 [shape = 'u8[8192]{0}', space=vmem, size = 0x2000, scoped, tag = 'input window, operand 4, single buffered']
    #allocation8 [shape = 'u8[8192]{0}', space=vmem, size = 0x2000, scoped, tag = 'output window, operand 0, single buffered']
    %14 = vsyncpa [#allocation3], 0
    %15 = vsyncpa [#allocation6], 0
    %16 = vsyncpa [#allocation4], 0
    // Predicated region
    $region2: #{tpu_custom_call.1} parent=1 // pred_check
      _
    $region3: #{tpu_custom_call.1} parent=1 // pred_check_branch
      %18 = sbr.rel (0) target = $region5
    $region4: #{tpu_custom_call.1} parent=1 // pred_region
      %20 = vsyncadd [#allocation3], 0
      %s21 = sshll.u32 %s0, 4
      %s22 = int_to_ptr.hbm [resolvable:$true] %s21
      %s23 = sshll.u32 [#allocation2], 4
      %s24 = int_to_ptr.vmem [resolvable:$true] %s23
      %29 = dma.hbm_to_vmem [thread:$0]  %s22, 256, %s24, [#allocation3], 128, 128, 8
    $region5: #{tpu_custom_call.1} parent=1 // pred_fallthru
      _
    // Predicated region
    $region6: #{tpu_custom_call.1} parent=1 // pred_check
      _
    $region7: #{tpu_custom_call.1} parent=1 // pred_check_branch
      %31 = sbr.rel (0) target = $region9
    $region8: #{tpu_custom_call.1} parent=1 // pred_region
      %33 = vsyncadd [#allocation6], 0
      %s34 = sshll.u32 %s1, 4
      %s35 = int_to_ptr.hbm [resolvable:$true] %s34
      %s36 = sshll.u32 [#allocation5], 4
      %s37 = int_to_ptr.vmem [resolvable:$true] %s36
      %42 = dma.hbm_to_vmem [thread:$0]  %s35, 256, %s37, [#allocation6], 64, 64, 4
    $region9: #{tpu_custom_call.1} parent=1 // pred_fallthru
      _
    // Predicated region
    $region10: #{tpu_custom_call.1} parent=1 // pred_check
      _
    $region11: #{tpu_custom_call.1} parent=1 // pred_check_branch
      %44 = sbr.rel (0) target = $region13
    $region12: #{tpu_custom_call.1} parent=1 // pred_region
      _
    $region13: #{tpu_custom_call.1} parent=1 // pred_fallthru
      _
    // Predicated region
    $region14: #{tpu_custom_call.1} parent=1 // pred_check
      _
    $region15: #{tpu_custom_call.1} parent=1 // pred_check_branch
      %46 = sbr.rel (0) target = $region17
    $region16: #{tpu_custom_call.1} parent=1 // pred_region
      _
    $region17: #{tpu_custom_call.1} parent=1 // pred_fallthru
      _
    // Predicated region
    $region18: #{tpu_custom_call.1} parent=1 // pred_check
      _
    $region19: #{tpu_custom_call.1} parent=1 // pred_check_branch
      %48 = sbr.rel (0) target = $region21
    $region20: #{tpu_custom_call.1} parent=1 // pred_region
      %50 = vsyncadd [#allocation6], 0
      %s51 = sshll.u32 %s4, 4
      %s52 = int_to_ptr.hbm [resolvable:$true] %s51
      %s53 = sshll.u32 [#allocation7], 4
      %s54 = int_to_ptr.vmem [resolvable:$true] %s53
      %59 = dma.hbm_to_vmem [thread:$0]  %s52, 256, %s54, [#allocation6], 64, 64, 4
    $region21: #{tpu_custom_call.1} parent=1 // pred_fallthru
      _
    // Predicated region
    $region22: #{tpu_custom_call.1} parent=1 // pred_check
      _
    $region23: #{tpu_custom_call.1} parent=1 // pred_check_branch
      %61 = sbr.rel (0) target = $region25
    $region24: #{tpu_custom_call.1} parent=1 // pred_region
      _
    $region25: #{tpu_custom_call.1} parent=1 // pred_fallthru
      _
    // Predicated region
    $region26: #{tpu_custom_call.1} parent=1 // pred_check
      _
    $region27: #{tpu_custom_call.1} parent=1 // pred_check_branch
      %63 = sbr.rel (0) target = $region29
    $region28: #{tpu_custom_call.1} parent=1 // pred_region
      _
    $region29: #{tpu_custom_call.1} parent=1 // pred_fallthru
      _
    // Predicated region
    $region30: #{tpu_custom_call.1} parent=1 // pred_check
      _
    $region31: #{tpu_custom_call.1} parent=1 // pred_check_branch
      %65 = sbr.rel (0) target = $region33
    $region32: #{tpu_custom_call.1} parent=1 // pred_region
      _
    $region33: #{tpu_custom_call.1} parent=1 // pred_fallthru
      _
    // Predicated region
    $region34: #{tpu_custom_call.1} parent=1 // pred_check
      _
    $region35: #{tpu_custom_call.1} parent=1 // pred_check_branch
      %67 = sbr.rel (0) target = $region37
    $region36: #{tpu_custom_call.1} parent=1 // pred_region
      _
    $region37: #{tpu_custom_call.1} parent=1 // pred_fallthru
      _
    // Predicated region
    $region38: #{tpu_custom_call.1} parent=1 // pred_check
      _
    $region39: #{tpu_custom_call.1} parent=1 // pred_check_branch
      %69 = sbr.rel (0) target = $region41
    $region40: #{tpu_custom_call.1} parent=1 // pred_region
      %71 = dma.done [#allocation3], 256
    $region41: #{tpu_custom_call.1} parent=1 // pred_fallthru
      _
    // Predicated region
    $region42: #{tpu_custom_call.1} parent=1 // pred_check
      _
    $region43: #{tpu_custom_call.1} parent=1 // pred_check_branch
      %73 = sbr.rel (0) target = $region45
    $region44: #{tpu_custom_call.1} parent=1 // pred_region
      %75 = dma.done [#allocation6], 256
    $region45: #{tpu_custom_call.1} parent=1 // pred_fallthru
      _
    // Predicated region
    $region46: #{tpu_custom_call.1} parent=1 // pred_check
      _
    $region47: #{tpu_custom_call.1} parent=1 // pred_check_branch
      %77 = sbr.rel (0) target = $region49
    $region48: #{tpu_custom_call.1} parent=1 // pred_region
      %79 = dma.done [#allocation6], 256
    $region49: #{tpu_custom_call.1} parent=1 // pred_fallthru
      _
    %v81 = vld [vmem:[%s6] sm:$0xff]
    %v82 = vld [vmem:[%s6 + $0x8] sm:$0xff]
    %v83 = vld [vmem:[%s6 + $0x10] sm:$0xff]
    %v84 = vld [vmem:[%s6 + $0x18] sm:$0x7]
    %v85 = vld [vmem:[#allocation2] sm:$0xff]
    %v86 = vld [vmem:[#allocation2 + $0x8] sm:$0xff]
    %v87 = vmul.f32 %v85, %v85
    %v88 = vmul.f32 %v86, %v86
    %vm89 = vcmask 261120
    %v90 = vsel %vm89, %v87, 0.0
    %91 = vadd.xlane.f32.xlu0 %v90
    %v92 = vpop.xlane.xlu0 %91
    %v93 = vsel %vm89, %v88, 0.0
    %94 = vadd.xlane.f32.xlu0 %v93
    %v95 = vpop.xlane.xlu0 %94
    %v96 = vadd.f32 %v92, 1e-06
    %v97 = vadd.f32 %v95, 1e-06
    %v98 = vrsqrt.pop %v96
    %v99 = vmul.f32 %v98, %v96
    %v100 = vmul.f32 %v99, %v98
    %v101 = vmul.f32 0.5, %v100
    %v102 = vsub.f32 1.5, %v101
    %v103 = vmul.f32 %v98, %v102
    %vm104 = vweird.f32 %v96
    %vm105 = vweird.f32 %v98
    %vm106 = vmor %vm104, %vm105
    %v107 = vsel %vm106, %v98, %v103
    %v108 = vrsqrt.pop %v97
    %v109 = vmul.f32 %v108, %v97
    %v110 = vmul.f32 %v109, %v108
    %v111 = vmul.f32 0.5, %v110
    %v112 = vsub.f32 1.5, %v111
    %v113 = vmul.f32 %v108, %v112
    %vm114 = vweird.f32 %v97
    %vm115 = vweird.f32 %v108
    %vm116 = vmor %vm114, %vm115
    %v117 = vsel %vm116, %v108, %v113
    %v118 = vperm.slane %v83, 7
    %v119 = vmul.f32 %v118, %v85
    %v120 = vmul.f32 %v118, %v86
    %v121 = vmul.f32 %v119, %v107
    %v122 = vmul.f32 %v120, %v117
    %v123 = vpack.c.bf16 %v122, %v121
    %v124 = vld [vmem:[#allocation5] sm:$0xf]
    %v125 = vld [vmem:[#allocation5 + $0x4] sm:$0xf]
    %v126 = vld [vmem:[#allocation5 + $0x8] sm:$0xf]
    %v127 = vld [vmem:[#allocation5 + $0xc] sm:$0xf]
    %v132 = vunpack.c.l.b16 %v124
    %v133 = vunpack.c.l.b16 %v125
    %v134 = vunpack.c.l.b16 %v126
    %v135 = vunpack.c.l.b16 %v127
    %v136 = vpack.c.b16 %v133, %v132
    %v137 = vpack.c.b16 %v135, %v134
    %v141 = vsel %vm89, %v123, 0
    %143 = vmatpush.bf16.msra.mxu0 0
    %144 = vmatpush.bf16.msra.mxu0 0
    %145 = vmatpush.bf16.msra.mxu0 0
    %146 = vmatpush.bf16.msra.mxu0 0
    %147 = vmatpush.bf16.msra.mxu0 0
    %148 = vmatpush.bf16.msra.mxu0 0
    %149 = vmatpush.bf16.msra.mxu0 %v137
    %150 = vmatpush.bf16.msra.mxu0 %v136
    %151 = vmatmul.bf16.gmra.mxu0 %v141
    %v152 = vpop.f32.mrf.mxu0
    %v153 = vadd.f32 0.0, %v152
    %v154 = vpop.f32.mrf.mxu0
    %v155 = vadd.f32 0.0, %v154
    %156 = vdwg.mxu0
    %v157 = vld [vmem:[%s7] sm:$0xf]
    %v158 = vld [vmem:[%s7 + $0x4] sm:$0xf]
    %v159 = vld [vmem:[%s7 + $0x8] sm:$0xf]
    %v160 = vld [vmem:[%s7 + $0xc] sm:$0xf]
    %v161 = vld [vmem:[%s7 + $0x10] sm:$0xf]
    %v162 = vld [vmem:[%s7 + $0x14] sm:$0xf]
    %v163 = vpack.c.bf16 %v155, %v153
    %v170 = vunpack.c.l.b16 %v157
    %v171 = vunpack.c.l.b16 %v158
    %v172 = vunpack.c.l.b16 %v159
    %v173 = vunpack.c.l.b16 %v160
    %v174 = vunpack.c.l.b16 %v161
    %v175 = vunpack.c.l.b16 %v162
    %v176 = vpack.c.b16 %v171, %v170
    %v177 = vpack.c.b16 %v173, %v172
    %v178 = vpack.c.b16 %v175, %v174
    %vm179 = vcmask 130048
    %v181 = vsel %vm179, %v176, 0
    %v184 = vsel %vm179, %v177, 0
    %v187 = vsel %vm179, %v178, 0
    %189 = vmatpush.bf16.msra.mxu0 0
    %190 = vmatpush.bf16.msra.mxu0 0
    %191 = vmatpush.bf16.msra.mxu0 0
    %192 = vmatpush.bf16.msra.mxu0 0
    %193 = vmatpush.bf16.msra.mxu0 0
    %194 = vmatpush.bf16.msra.mxu0 0
    %195 = vmatpush.bf16.msra.mxu0 0
    %196 = vmatpush.bf16.msra.mxu0 %v163
    %197 = vmatmul.bf16.gmra.mxu0 %v181
    %v198 = vpop.f32.mrf.mxu0
    %v199 = vadd.f32 0.0, %v198
    %v200 = vpop.f32.mrf.mxu0
    %v201 = vadd.f32 0.0, %v200
    %202 = vmatmul.bf16.gmra.mxu0 %v184
    %v203 = vpop.f32.mrf.mxu0
    %v204 = vadd.f32 0.0, %v203
    %v205 = vpop.f32.mrf.mxu0
    %v206 = vadd.f32 0.0, %v205
    %207 = vmatmul.bf16.gmra.mxu0 %v187
    %v208 = vpop.f32.mrf.mxu0
    %v209 = vadd.f32 0.0, %v208
    %v210 = vpop.f32.mrf.mxu0
    %v211 = vadd.f32 0.0, %v210
    %212 = vdwg.mxu0
    %v213 = vperm.slane %v83, 3
    %v214 = vmul.f32 %v153, %v213
    %v215 = vmul.f32 %v155, %v213
    %v216 = vperm.slane %v83, 2
    %v217 = vmul.f32 %v199, %v216
    %v218 = vmul.f32 %v201, %v216
    %v219 = vadd.f32 %v214, %v217
    %v220 = vadd.f32 %v215, %v218
    %v221 = vperm.slane %v83, 1
    %v222 = vmul.f32 %v204, %v221
    %v223 = vmul.f32 %v206, %v221
    %v224 = vadd.f32 %v219, %v222
    %v225 = vadd.f32 %v220, %v223
    %v226 = vperm.slane %v83, 0
    %v227 = vmul.f32 %v209, %v226
    %v228 = vmul.f32 %v211, %v226
    %v229 = vadd.f32 %v224, %v227
    %v230 = vadd.f32 %v225, %v228
    %v231 = vperm.slane %v83, 4
    %v232 = vadd.f32 %v229, %v231
    %v233 = vadd.f32 %v230, %v231
    %v234 = vsub.f32 0.0, %v232
    %v235 = vsub.f32 0.0, %v233
    %v236 = vmul.f32 %v234, 1.442695
    %v237 = vpow.pop %v236
    %v238 = vmul.f32 %v235, 1.442695
    %v239 = vpow.pop %v238
    %v240 = vadd.f32 %v237, 1.0
    %v241 = vadd.f32 %v239, 1.0
    %v242 = vrcp.pop %v240
    %v243 = vrcp.pop %v241
    %v244 = vmul.f32 %v232, %v242
    %v245 = vmul.f32 %v233, %v243
    %v246 = vpack.c.bf16 %v245, %v244
    %v247 = vld [vmem:[%s2] sm:$0xf]
    %v248 = vld [vmem:[%s2 + $0x4] sm:$0xf]
    %v249 = vld [vmem:[%s2 + $0x8] sm:$0xf]
    %v250 = vld [vmem:[%s2 + $0xc] sm:$0xf]
    %v251 = vld [vmem:[%s2 + $0x10] sm:$0xf]
    %v252 = vld [vmem:[%s2 + $0x14] sm:$0xf]
    %v253 = vld [vmem:[%s2 + $0x18] sm:$0xf]
    %v254 = vld [vmem:[%s2 + $0x1c] sm:$0xf]
    %v263 = vunpack.c.l.b16 %v247
    %v264 = vunpack.c.l.b16 %v248
    %v265 = vunpack.c.l.b16 %v249
    %v266 = vunpack.c.l.b16 %v250
    %v267 = vunpack.c.l.b16 %v251
    %v268 = vunpack.c.l.b16 %v252
    %v269 = vunpack.c.l.b16 %v253
    %v270 = vunpack.c.l.b16 %v254
    %v271 = vpack.c.b16 %v264, %v263
    %v272 = vpack.c.b16 %v266, %v265
    %v273 = vpack.c.b16 %v268, %v267
    %v274 = vpack.c.b16 %v270, %v269
    %vm279 = vcmask 523264
    %v281 = vsel %vm279, %v246, 0
    %283 = vmatpush.bf16.msra.mxu0 0
    %284 = vmatpush.bf16.msra.mxu0 0
    %285 = vmatpush.bf16.msra.mxu0 0
    %286 = vmatpush.bf16.msra.mxu0 0
    %287 = vmatpush.bf16.msra.mxu0 %v274
    %288 = vmatpush.bf16.msra.mxu0 %v273
    %289 = vmatpush.bf16.msra.mxu0 %v272
    %290 = vmatpush.bf16.msra.mxu0 %v271
    %291 = vmatmul.bf16.gmra.mxu0 %v281
    %v292 = vpop.f32.mrf.mxu0
    %v293 = vadd.f32 0.0, %v292
    %v294 = vpop.f32.mrf.mxu0
    %v295 = vadd.f32 0.0, %v294
    %296 = vdwg.mxu0
    %v297 = vperm.slane %v83, 5
    %v298 = vadd.f32 %v293, %v297
    %v299 = vadd.f32 %v295, %v297
    %v300 = vmax.f32 %v298, 0.0
    %v301 = vmax.f32 %v299, 0.0
    %v302 = vand.u32 2147483647, %v298
    %v303 = vand.u32 2147483647, %v299
    %v304 = vsub.f32 0.0, %v302
    %v305 = vsub.f32 0.0, %v303
    %v306 = vmul.f32 %v304, 1.442695
    %v307 = vpow.pop %v306
    %v308 = vmul.f32 %v305, 1.442695
    %v309 = vpow.pop %v308
    %v310 = vadd.f32 %v307, 1.0
    %v311 = vadd.f32 %v309, 1.0
    %v312 = vlog2.pop %v310
    %v313 = vmul.f32 %v312, 0.6931472
    %v314 = vlog2.pop %v311
    %v315 = vmul.f32 %v314, 0.6931472
    %v316 = vadd.f32 %v300, %v313
    %v317 = vadd.f32 %v301, %v315
    %v318 = vmul.f32 %v316, %v244
    %v319 = vmul.f32 %v317, %v245
    %321 = vrot.lane.b32.xlu0 %v317, 64
    %v322 = vpop.permute.xlu0 %321
    %v324 = vsel %vm279, %v316, %v322
    %326 = vrot.lane.b32.xlu0 %v319, 64
    %v327 = vpop.permute.xlu0 %326
    %v329 = vsel %vm279, %v318, %v327
    %332 = vrot.lane.b32.xlu0 %v293, 64
    %v333 = vpop.permute.xlu0 %332
    %334 = vrot.lane.b32.xlu0 %v295, 64
    %v335 = vpop.permute.xlu0 %334
    %338 = vxpose.xlu0.b32.start [1/16] %v333, 128
    %339 = vxpose.xlu0.b32.cont [2/16] %v335, 128
    %340 = vxpose.xlu0.b32.cont [3/16] 0.0, 128
    %341 = vxpose.xlu0.b32.cont [4/16] 0.0, 128
    %342 = vxpose.xlu0.b32.cont [5/16] 0.0, 128
    %343 = vxpose.xlu0.b32.cont [6/16] 0.0, 128
    %344 = vxpose.xlu0.b32.cont [7/16] 0.0, 128
    %345 = vxpose.xlu0.b32.cont [8/16] 0.0, 128
    %346 = vxpose.xlu0.b32.cont [9/16] 0.0, 128
    %347 = vxpose.xlu0.b32.cont [10/16] 0.0, 128
    %348 = vxpose.xlu0.b32.cont [11/16] 0.0, 128
    %349 = vxpose.xlu0.b32.cont [12/16] 0.0, 128
    %350 = vxpose.xlu0.b32.cont [13/16] 0.0, 128
    %351 = vxpose.xlu0.b32.cont [14/16] 0.0, 128
    %352 = vxpose.xlu0.b32.cont [15/16] 0.0, 128
    %353 = vxpose.xlu0.b32.end [16/16] 0.0, 128
    %v354 = vpop.trf.xlu0
    %v355 = vpop.trf.xlu0
    %v356 = vpop.trf.xlu0
    %v357 = vpop.trf.xlu0
    %v358 = vpop.trf.xlu0
    %v359 = vpop.trf.xlu0
    %v360 = vpop.trf.xlu0
    %v361 = vpop.trf.xlu0
    %v362 = vpop.trf.xlu0
    %v363 = vpop.trf.xlu0
    %v364 = vpop.trf.xlu0
    %v365 = vpop.trf.xlu0
    %v366 = vpop.trf.xlu0
    %v367 = vpop.trf.xlu0
    %v368 = vpop.trf.xlu0
    %v369 = vpop.trf.xlu0
    %v370 = vpack.c.bf16 %v355, %v354
    %v371 = vpack.c.bf16 %v357, %v356
    %v372 = vld [vmem:[%s8] sm:$0xff]
    %v373 = vld [vmem:[%s8 + $0x8] sm:$0xff]
    %v374 = vld [vmem:[%s8 + $0x10] sm:$0xff]
    %v375 = vld [vmem:[%s8 + $0x18] sm:$0xff]
    %v376 = vld [vmem:[%s8 + $0x20] sm:$0xff]
    %v377 = vld [vmem:[%s8 + $0x28] sm:$0xff]
    %v378 = vld [vmem:[%s8 + $0x30] sm:$0xff]
    %v379 = vld [vmem:[%s8 + $0x38] sm:$0xff]
    %v388 = vunpack.c.l.b16 %v372
    %v389 = vunpack.c.h.b16 %v372
    %v390 = vunpack.c.l.b16 %v373
    %v391 = vunpack.c.h.b16 %v373
    %v392 = vunpack.c.l.b16 %v374
    %v393 = vunpack.c.h.b16 %v374
    %v394 = vunpack.c.l.b16 %v375
    %v395 = vunpack.c.h.b16 %v375
    %v396 = vunpack.c.l.b16 %v376
    %v397 = vunpack.c.h.b16 %v376
    %v398 = vunpack.c.l.b16 %v377
    %v399 = vunpack.c.h.b16 %v377
    %v400 = vunpack.c.l.b16 %v378
    %v401 = vunpack.c.h.b16 %v378
    %v402 = vunpack.c.l.b16 %v379
    %v403 = vunpack.c.h.b16 %v379
    %v404 = vpack.c.b16 %v396, %v388
    %v405 = vpack.c.b16 %v397, %v389
    %v406 = vpack.c.b16 %v398, %v390
    %v407 = vpack.c.b16 %v399, %v391
    %v408 = vpack.c.b16 %v400, %v392
    %v409 = vpack.c.b16 %v401, %v393
    %v410 = vpack.c.b16 %v402, %v394
    %v411 = vpack.c.b16 %v403, %v395
    %v421 = vsel %vm179, %v370, 0
    %v424 = vsel %vm179, %v371, 0
    %426 = vmatpush.bf16.msra.mxu0 0
    %427 = vmatpush.bf16.msra.mxu0 0
    %428 = vmatpush.bf16.msra.mxu0 0
    %429 = vmatpush.bf16.msra.mxu0 0
    %430 = vmatpush.bf16.msra.mxu0 0
    %431 = vmatpush.bf16.msra.mxu0 0
    %432 = vmatpush.bf16.msra.mxu0 0
    %433 = vmatpush.bf16.msra.mxu0 %v404
    %434 = vmatmul.bf16.gmra.mxu0 %v421
    %v435 = vpop.f32.mrf.mxu0
    %v436 = vadd.f32 0.0, %v435
    %v437 = vpop.f32.mrf.mxu0
    %v438 = vadd.f32 0.0, %v437
    %439 = vmatmul.bf16.gmra.mxu0 %v424
    %v440 = vpop.f32.mrf.mxu0
    %v441 = vadd.f32 0.0, %v440
    %v442 = vpop.f32.mrf.mxu0
    %v443 = vadd.f32 0.0, %v442
    %444 = vdwg.mxu0
    %445 = vmatpush.bf16.msra.mxu0 0
    %446 = vmatpush.bf16.msra.mxu0 0
    %447 = vmatpush.bf16.msra.mxu0 0
    %448 = vmatpush.bf16.msra.mxu0 0
    %449 = vmatpush.bf16.msra.mxu0 0
    %450 = vmatpush.bf16.msra.mxu0 0
    %451 = vmatpush.bf16.msra.mxu0 0
    %452 = vmatpush.bf16.msra.mxu0 %v405
    %453 = vmatmul.bf16.gmra.mxu0 %v421
    %v454 = vpop.f32.mrf.mxu0
    %v455 = vadd.f32 0.0, %v454
    %v456 = vpop.f32.mrf.mxu0
    %v457 = vadd.f32 0.0, %v456
    %458 = vmatmul.bf16.gmra.mxu0 %v424
    %v459 = vpop.f32.mrf.mxu0
    %v460 = vadd.f32 0.0, %v459
    %v461 = vpop.f32.mrf.mxu0
    %v462 = vadd.f32 0.0, %v461
    %463 = vdwg.mxu0
    %464 = vmatpush.bf16.msra.mxu0 0
    %465 = vmatpush.bf16.msra.mxu0 0
    %466 = vmatpush.bf16.msra.mxu0 0
    %467 = vmatpush.bf16.msra.mxu0 0
    %468 = vmatpush.bf16.msra.mxu0 0
    %469 = vmatpush.bf16.msra.mxu0 0
    %470 = vmatpush.bf16.msra.mxu0 0
    %471 = vmatpush.bf16.msra.mxu0 %v406
    %472 = vmatmul.bf16.gmra.mxu0 %v421
    %v473 = vpop.f32.mrf.mxu0
    %v474 = vadd.f32 0.0, %v473
    %v475 = vpop.f32.mrf.mxu0
    %v476 = vadd.f32 0.0, %v475
    %477 = vmatmul.bf16.gmra.mxu0 %v424
    %v478 = vpop.f32.mrf.mxu0
    %v479 = vadd.f32 0.0, %v478
    %v480 = vpop.f32.mrf.mxu0
    %v481 = vadd.f32 0.0, %v480
    %482 = vdwg.mxu0
    %483 = vmatpush.bf16.msra.mxu0 0
    %484 = vmatpush.bf16.msra.mxu0 0
    %485 = vmatpush.bf16.msra.mxu0 0
    %486 = vmatpush.bf16.msra.mxu0 0
    %487 = vmatpush.bf16.msra.mxu0 0
    %488 = vmatpush.bf16.msra.mxu0 0
    %489 = vmatpush.bf16.msra.mxu0 0
    %490 = vmatpush.bf16.msra.mxu0 %v407
    %491 = vmatmul.bf16.gmra.mxu0 %v421
    %v492 = vpop.f32.mrf.mxu0
    %v493 = vadd.f32 0.0, %v492
    %v494 = vpop.f32.mrf.mxu0
    %v495 = vadd.f32 0.0, %v494
    %496 = vmatmul.bf16.gmra.mxu0 %v424
    %v497 = vpop.f32.mrf.mxu0
    %v498 = vadd.f32 0.0, %v497
    %v499 = vpop.f32.mrf.mxu0
    %v500 = vadd.f32 0.0, %v499
    %501 = vdwg.mxu0
    %502 = vmatpush.bf16.msra.mxu0 0
    %503 = vmatpush.bf16.msra.mxu0 0
    %504 = vmatpush.bf16.msra.mxu0 0
    %505 = vmatpush.bf16.msra.mxu0 0
    %506 = vmatpush.bf16.msra.mxu0 0
    %507 = vmatpush.bf16.msra.mxu0 0
    %508 = vmatpush.bf16.msra.mxu0 0
    %509 = vmatpush.bf16.msra.mxu0 %v408
    %510 = vmatmul.bf16.gmra.mxu0 %v421
    %v511 = vpop.f32.mrf.mxu0
    %v512 = vadd.f32 0.0, %v511
    %v513 = vpop.f32.mrf.mxu0
    %v514 = vadd.f32 0.0, %v513
    %515 = vmatmul.bf16.gmra.mxu0 %v424
    %v516 = vpop.f32.mrf.mxu0
    %v517 = vadd.f32 0.0, %v516
    %v518 = vpop.f32.mrf.mxu0
    %v519 = vadd.f32 0.0, %v518
    %520 = vdwg.mxu0
    %521 = vmatpush.bf16.msra.mxu0 0
    %522 = vmatpush.bf16.msra.mxu0 0
    %523 = vmatpush.bf16.msra.mxu0 0
    %524 = vmatpush.bf16.msra.mxu0 0
    %525 = vmatpush.bf16.msra.mxu0 0
    %526 = vmatpush.bf16.msra.mxu0 0
    %527 = vmatpush.bf16.msra.mxu0 0
    %528 = vmatpush.bf16.msra.mxu0 %v409
    %529 = vmatmul.bf16.gmra.mxu0 %v421
    %v530 = vpop.f32.mrf.mxu0
    %v531 = vadd.f32 0.0, %v530
    %v532 = vpop.f32.mrf.mxu0
    %v533 = vadd.f32 0.0, %v532
    %534 = vmatmul.bf16.gmra.mxu0 %v424
    %v535 = vpop.f32.mrf.mxu0
    %v536 = vadd.f32 0.0, %v535
    %v537 = vpop.f32.mrf.mxu0
    %v538 = vadd.f32 0.0, %v537
    %539 = vdwg.mxu0
    %540 = vmatpush.bf16.msra.mxu0 0
    %541 = vmatpush.bf16.msra.mxu0 0
    %542 = vmatpush.bf16.msra.mxu0 0
    %543 = vmatpush.bf16.msra.mxu0 0
    %544 = vmatpush.bf16.msra.mxu0 0
    %545 = vmatpush.bf16.msra.mxu0 0
    %546 = vmatpush.bf16.msra.mxu0 0
    %547 = vmatpush.bf16.msra.mxu0 %v410
    %548 = vmatmul.bf16.gmra.mxu0 %v421
    %v549 = vpop.f32.mrf.mxu0
    %v550 = vadd.f32 0.0, %v549
    %v551 = vpop.f32.mrf.mxu0
    %v552 = vadd.f32 0.0, %v551
    %553 = vmatmul.bf16.gmra.mxu0 %v424
    %v554 = vpop.f32.mrf.mxu0
    %v555 = vadd.f32 0.0, %v554
    %v556 = vpop.f32.mrf.mxu0
    %v557 = vadd.f32 0.0, %v556
    %558 = vdwg.mxu0
    %559 = vmatpush.bf16.msra.mxu0 0
    %560 = vmatpush.bf16.msra.mxu0 0
    %561 = vmatpush.bf16.msra.mxu0 0
    %562 = vmatpush.bf16.msra.mxu0 0
    %563 = vmatpush.bf16.msra.mxu0 0
    %564 = vmatpush.bf16.msra.mxu0 0
    %565 = vmatpush.bf16.msra.mxu0 0
    %566 = vmatpush.bf16.msra.mxu0 %v411
    %567 = vmatmul.bf16.gmra.mxu0 %v421
    %v568 = vpop.f32.mrf.mxu0
    %v569 = vadd.f32 0.0, %v568
    %v570 = vpop.f32.mrf.mxu0
    %v571 = vadd.f32 0.0, %v570
    %572 = vmatmul.bf16.gmra.mxu0 %v424
    %v573 = vpop.f32.mrf.mxu0
    %v574 = vadd.f32 0.0, %v573
    %v575 = vpop.f32.mrf.mxu0
    %v576 = vadd.f32 0.0, %v575
    %577 = vdwg.mxu0
    %v578 = vperm.slane %v324, 0
    %v579 = vmul.f32 %v81, %v578
    %v580 = vmul.f32 %v82, %v578
    %v581 = vmul.f32 %v579, 1.442695
    %v582 = vpow.pop %v581
    %v583 = vmul.f32 %v580, 1.442695
    %v584 = vpow.pop %v583
    %v585 = vperm.slane %v329, 0
    %v586 = vmul.f32 %v436, %v585
    %v587 = vmul.f32 %v438, %v585
    %v588 = vperm.slane %v324, 1
    %v589 = vmul.f32 %v81, %v588
    %v590 = vmul.f32 %v82, %v588
    %v591 = vmul.f32 %v589, 1.442695
    %v592 = vpow.pop %v591
    %v593 = vmul.f32 %v590, 1.442695
    %v594 = vpow.pop %v593
    %v595 = vperm.slane %v329, 1
    %v596 = vmul.f32 %v455, %v595
    %v597 = vmul.f32 %v457, %v595
    %v598 = vperm.slane %v324, 2
    %v599 = vmul.f32 %v81, %v598
    %v600 = vmul.f32 %v82, %v598
    %v601 = vmul.f32 %v599, 1.442695
    %v602 = vpow.pop %v601
    %v603 = vmul.f32 %v600, 1.442695
    %v604 = vpow.pop %v603
    %v605 = vperm.slane %v329, 2
    %v606 = vmul.f32 %v474, %v605
    %v607 = vmul.f32 %v476, %v605
    %v608 = vperm.slane %v324, 3
    %v609 = vmul.f32 %v81, %v608
    %v610 = vmul.f32 %v82, %v608
    %v611 = vmul.f32 %v609, 1.442695
    %v612 = vpow.pop %v611
    %v613 = vmul.f32 %v610, 1.442695
    %v614 = vpow.pop %v613
    %v615 = vperm.slane %v329, 3
    %v616 = vmul.f32 %v493, %v615
    %v617 = vmul.f32 %v495, %v615
    %v618 = vperm.slane %v324, 4
    %v619 = vmul.f32 %v81, %v618
    %v620 = vmul.f32 %v82, %v618
    %v621 = vmul.f32 %v619, 1.442695
    %v622 = vpow.pop %v621
    %v623 = vmul.f32 %v620, 1.442695
    %v624 = vpow.pop %v623
    %v625 = vperm.slane %v329, 4
    %v626 = vmul.f32 %v512, %v625
    %v627 = vmul.f32 %v514, %v625
    %v628 = vperm.slane %v324, 5
    %v629 = vmul.f32 %v81, %v628
    %v630 = vmul.f32 %v82, %v628
    %v631 = vmul.f32 %v629, 1.442695
    %v632 = vpow.pop %v631
    %v633 = vmul.f32 %v630, 1.442695
    %v634 = vpow.pop %v633
    %v635 = vperm.slane %v329, 5
    %v636 = vmul.f32 %v531, %v635
    %v637 = vmul.f32 %v533, %v635
    %v638 = vperm.slane %v324, 6
    %v639 = vmul.f32 %v81, %v638
    %v640 = vmul.f32 %v82, %v638
    %v641 = vmul.f32 %v639, 1.442695
    %v642 = vpow.pop %v641
    %v643 = vmul.f32 %v640, 1.442695
    %v644 = vpow.pop %v643
    %v645 = vperm.slane %v329, 6
    %v646 = vmul.f32 %v550, %v645
    %v647 = vmul.f32 %v552, %v645
    %v648 = vperm.slane %v324, 7
    %v649 = vmul.f32 %v81, %v648
    %v650 = vmul.f32 %v82, %v648
    %v651 = vmul.f32 %v649, 1.442695
    %v652 = vpow.pop %v651
    %v653 = vmul.f32 %v650, 1.442695
    %v654 = vpow.pop %v653
    %v655 = vperm.slane %v329, 7
    %v656 = vmul.f32 %v569, %v655
    %v657 = vmul.f32 %v571, %v655
    %v658 = vmul.f32 %v582, 0.0
    %v659 = vmul.f32 %v584, 0.0
    %v660 = vadd.f32 %v658, %v586
    %v661 = vadd.f32 %v659, %v587
    %v662 = vmul.f32 %v592, %v660
    %v663 = vmul.f32 %v594, %v661
    %v664 = vadd.f32 %v662, %v596
    %v665 = vadd.f32 %v663, %v597
    %v666 = vmul.f32 %v602, %v664
    %v667 = vmul.f32 %v604, %v665
    %v668 = vadd.f32 %v666, %v606
    %v669 = vadd.f32 %v667, %v607
    %v670 = vmul.f32 %v612, %v668
    %v671 = vmul.f32 %v614, %v669
    %v672 = vadd.f32 %v670, %v616
    %v673 = vadd.f32 %v671, %v617
    %v674 = vmul.f32 %v622, %v672
    %v675 = vmul.f32 %v624, %v673
    %v676 = vadd.f32 %v674, %v626
    %v677 = vadd.f32 %v675, %v627
    %v678 = vmul.f32 %v632, %v676
    %v679 = vmul.f32 %v634, %v677
    %v680 = vadd.f32 %v678, %v636
    %v681 = vadd.f32 %v679, %v637
    %v682 = vmul.f32 %v642, %v680
    %v683 = vmul.f32 %v644, %v681
    %v684 = vadd.f32 %v682, %v646
    %v685 = vadd.f32 %v683, %v647
    %v686 = vmul.f32 %v652, %v684
    %v687 = vmul.f32 %v654, %v685
    %v688 = vadd.f32 %v686, %v656
    %v689 = vadd.f32 %v687, %v657
    %v690 = vmul.f32 %v441, %v660
    %v691 = vmul.f32 %v443, %v661
    %v692 = vadd.f32 %v690, %v691
    %v693 = vrot.slane %v692, 4
    %v694 = vadd.f32 %v692, %v693
    %v695 = vrot.slane %v694, 2
    %v696 = vadd.f32 %v694, %v695
    %v697 = vrot.slane %v696, 1
    %v698 = vadd.f32 %v696, %v697
    %v699 = vmul.f32 %v460, %v664
    %v700 = vmul.f32 %v462, %v665
    %v701 = vadd.f32 %v699, %v700
    %v702 = vrot.slane %v701, 4
    %v703 = vadd.f32 %v701, %v702
    %v704 = vrot.slane %v703, 2
    %v705 = vadd.f32 %v703, %v704
    %v706 = vrot.slane %v705, 1
    %v707 = vadd.f32 %v705, %v706
    %v708 = vmul.f32 %v479, %v668
    %v709 = vmul.f32 %v481, %v669
    %v710 = vadd.f32 %v708, %v709
    %v711 = vrot.slane %v710, 4
    %v712 = vadd.f32 %v710, %v711
    %v713 = vrot.slane %v712, 2
    %v714 = vadd.f32 %v712, %v713
    %v715 = vrot.slane %v714, 1
    %v716 = vadd.f32 %v714, %v715
    %v717 = vmul.f32 %v498, %v672
    %v718 = vmul.f32 %v500, %v673
    %v719 = vadd.f32 %v717, %v718
    %v720 = vrot.slane %v719, 4
    %v721 = vadd.f32 %v719, %v720
    %v722 = vrot.slane %v721, 2
    %v723 = vadd.f32 %v721, %v722
    %v724 = vrot.slane %v723, 1
    %v725 = vadd.f32 %v723, %v724
    %v726 = vmul.f32 %v517, %v676
    %v727 = vmul.f32 %v519, %v677
    %v728 = vadd.f32 %v726, %v727
    %v729 = vrot.slane %v728, 4
    %v730 = vadd.f32 %v728, %v729
    %v731 = vrot.slane %v730, 2
    %v732 = vadd.f32 %v730, %v731
    %v733 = vrot.slane %v732, 1
    %v734 = vadd.f32 %v732, %v733
    %v735 = vmul.f32 %v536, %v680
    %v736 = vmul.f32 %v538, %v681
    %v737 = vadd.f32 %v735, %v736
    %v738 = vrot.slane %v737, 4
    %v739 = vadd.f32 %v737, %v738
    %v740 = vrot.slane %v739, 2
    %v741 = vadd.f32 %v739, %v740
    %v742 = vrot.slane %v741, 1
    %v743 = vadd.f32 %v741, %v742
    %v744 = vmul.f32 %v555, %v684
    %v745 = vmul.f32 %v557, %v685
    %v746 = vadd.f32 %v744, %v745
    %v747 = vrot.slane %v746, 4
    %v748 = vadd.f32 %v746, %v747
    %v749 = vrot.slane %v748, 2
    %v750 = vadd.f32 %v748, %v749
    %v751 = vrot.slane %v750, 1
    %v752 = vadd.f32 %v750, %v751
    %v753 = vmul.f32 %v574, %v688
    %v754 = vmul.f32 %v576, %v689
    %v755 = vadd.f32 %v753, %v754
    %v756 = vrot.slane %v755, 4
    %v757 = vadd.f32 %v755, %v756
    %v758 = vrot.slane %v757, 2
    %v759 = vadd.f32 %v757, %v758
    %v760 = vrot.slane %v759, 1
    %v761 = vadd.f32 %v759, %v760
    %vm762 = vcmask 1040384
    %v763 = vsel %vm762, %v698, %v707
    %vm764 = vcmask 1041408
    %v765 = vsel %vm764, %v763, %v716
    %vm766 = vcmask 1042432
    %v767 = vsel %vm766, %v765, %v725
    %vm768 = vcmask 1043456
    %v769 = vsel %vm768, %v767, %v734
    %vm770 = vcmask 1044480
    %v771 = vsel %vm770, %v769, %v743
    %vm772 = vcmask 1045504
    %v773 = vsel %vm772, %v771, %v752
    %vm774 = vcmask 1046528
    %v775 = vsel %vm774, %v773, %v761
    %777 = vrot.lane.b32.xlu0 %v775, 64
    %v778 = vpop.permute.xlu0 %777
    %v780 = vperm.slane %v83, 6
    %v781 = vmul.f32 %v244, %v780
    %v782 = vmul.f32 %v245, %v780
    %v783 = vadd.f32 %v775, %v781
    %v784 = vadd.f32 %v778, %v782
    %v785 = vsub.f32 0.0, %v153
    %v786 = vsub.f32 0.0, %v155
    %v787 = vmul.f32 %v785, 1.442695
    %v788 = vpow.pop %v787
    %v789 = vmul.f32 %v786, 1.442695
    %v790 = vpow.pop %v789
    %v791 = vadd.f32 %v788, 1.0
    %v792 = vadd.f32 %v790, 1.0
    %v793 = vrcp.pop %v791
    %v794 = vrcp.pop %v792
    %v795 = vmul.f32 %v153, %v793
    %v796 = vmul.f32 %v155, %v794
    %799 = vrot.lane.b32.xlu0 %v795, 64
    %v800 = vpop.permute.xlu0 %799
    %801 = vrot.lane.b32.xlu0 %v796, 64
    %v802 = vpop.permute.xlu0 %801
    %v805 = vmul.f32 %v783, %v800
    %v806 = vmul.f32 %v784, %v802
    %v807 = vpack.c.bf16 %v806, %v805
    %v808 = vld [vmem:[%s3] sm:$0xf]
    %v809 = vld [vmem:[%s3 + $0x4] sm:$0xf]
    %v810 = vld [vmem:[%s3 + $0x8] sm:$0xf]
    %v811 = vld [vmem:[%s3 + $0xc] sm:$0xf]
    %v812 = vld [vmem:[%s3 + $0x10] sm:$0xf]
    %v813 = vld [vmem:[%s3 + $0x14] sm:$0xf]
    %v814 = vld [vmem:[%s3 + $0x18] sm:$0xf]
    %v815 = vld [vmem:[%s3 + $0x1c] sm:$0xf]
    %v824 = vunpack.c.l.b16 %v808
    %v825 = vunpack.c.l.b16 %v809
    %v826 = vunpack.c.l.b16 %v810
    %v827 = vunpack.c.l.b16 %v811
    %v828 = vunpack.c.l.b16 %v812
    %v829 = vunpack.c.l.b16 %v813
    %v830 = vunpack.c.l.b16 %v814
    %v831 = vunpack.c.l.b16 %v815
    %v832 = vpack.c.b16 %v825, %v824
    %v833 = vpack.c.b16 %v827, %v826
    %v834 = vpack.c.b16 %v829, %v828
    %v835 = vpack.c.b16 %v831, %v830
    %v841 = vsel %vm279, %v807, 0
    %843 = vmatpush.bf16.msra.mxu0 0
    %844 = vmatpush.bf16.msra.mxu0 0
    %845 = vmatpush.bf16.msra.mxu0 0
    %846 = vmatpush.bf16.msra.mxu0 0
    %847 = vmatpush.bf16.msra.mxu0 %v835
    %848 = vmatpush.bf16.msra.mxu0 %v834
    %849 = vmatpush.bf16.msra.mxu0 %v833
    %850 = vmatpush.bf16.msra.mxu0 %v832
    %851 = vmatmul.bf16.gmra.mxu0 %v841
    %v852 = vpop.f32.mrf.mxu0
    %v853 = vadd.f32 0.0, %v852
    %v854 = vpop.f32.mrf.mxu0
    %v855 = vadd.f32 0.0, %v854
    %856 = vdwg.mxu0
    %v857 = vadd.f32 %v85, %v853
    %v858 = vadd.f32 %v86, %v855
    %v859 = vmul.f32 %v857, %v857
    %v860 = vmul.f32 %v858, %v858
    %v861 = vsel %vm89, %v859, 0.0
    %862 = vadd.xlane.f32.xlu0 %v861
    %v863 = vpop.xlane.xlu0 %862
    %v864 = vsel %vm89, %v860, 0.0
    %865 = vadd.xlane.f32.xlu0 %v864
    %v866 = vpop.xlane.xlu0 %865
    %v867 = vadd.f32 %v863, 1e-06
    %v868 = vadd.f32 %v866, 1e-06
    %v869 = vrsqrt.pop %v867
    %v870 = vmul.f32 %v869, %v867
    %v871 = vmul.f32 %v870, %v869
    %v872 = vmul.f32 0.5, %v871
    %v873 = vsub.f32 1.5, %v872
    %v874 = vmul.f32 %v869, %v873
    %vm875 = vweird.f32 %v867
    %vm876 = vweird.f32 %v869
    %vm877 = vmor %vm875, %vm876
    %v878 = vsel %vm877, %v869, %v874
    %v879 = vrsqrt.pop %v868
    %v880 = vmul.f32 %v879, %v868
    %v881 = vmul.f32 %v880, %v879
    %v882 = vmul.f32 0.5, %v881
    %v883 = vsub.f32 1.5, %v882
    %v884 = vmul.f32 %v879, %v883
    %vm885 = vweird.f32 %v868
    %vm886 = vweird.f32 %v879
    %vm887 = vmor %vm885, %vm886
    %v888 = vsel %vm887, %v879, %v884
    %v889 = vperm.slane %v84, 0
    %v890 = vmul.f32 %v889, %v857
    %v891 = vmul.f32 %v889, %v858
    %v892 = vmul.f32 %v890, %v878
    %v893 = vmul.f32 %v891, %v888
    %v894 = vpack.c.bf16 %v893, %v892
    %v895 = vld [vmem:[#allocation7] sm:$0xf]
    %v896 = vld [vmem:[#allocation7 + $0x4] sm:$0xf]
    %v897 = vld [vmem:[#allocation7 + $0x8] sm:$0xf]
    %v898 = vld [vmem:[#allocation7 + $0xc] sm:$0xf]
    %v899 = vperm.slane %v84, 2
    %v904 = vunpack.c.l.b16 %v895
    %v905 = vunpack.c.l.b16 %v896
    %v906 = vunpack.c.l.b16 %v897
    %v907 = vunpack.c.l.b16 %v898
    %v908 = vpack.c.b16 %v905, %v904
    %v909 = vpack.c.b16 %v907, %v906
    %v913 = vsel %vm89, %v894, 0
    %915 = vmatpush.bf16.msra.mxu0 0
    %916 = vmatpush.bf16.msra.mxu0 0
    %917 = vmatpush.bf16.msra.mxu0 0
    %918 = vmatpush.bf16.msra.mxu0 0
    %919 = vmatpush.bf16.msra.mxu0 0
    %920 = vmatpush.bf16.msra.mxu0 0
    %921 = vmatpush.bf16.msra.mxu0 %v909
    %922 = vmatpush.bf16.msra.mxu0 %v908
    %923 = vmatmul.bf16.gmra.mxu0 %v913
    %v924 = vpop.f32.mrf.mxu0
    %v925 = vadd.f32 %v899, %v924
    %v926 = vpop.f32.mrf.mxu0
    %v927 = vadd.f32 %v899, %v926
    %928 = vdwg.mxu0
    %v929 = vmul.f32 %v925, 0.5
    %v930 = vmul.f32 %v927, 0.5
    %v931 = vmul.f32 %v925, 0.044715
    %v932 = vmul.f32 %v927, 0.044715
    %v933 = vmul.f32 %v931, %v925
    %v934 = vmul.f32 %v932, %v927
    %v935 = vmul.f32 %v933, %v925
    %v936 = vmul.f32 %v934, %v927
    %v937 = vadd.f32 %v925, %v935
    %v938 = vadd.f32 %v927, %v936
    %v939 = vmul.f32 %v937, 0.7978846
    %v940 = vmul.f32 %v938, 0.7978846
    %v941 = vtanh.pop %v939
    %v942 = vtanh.pop %v940
    %v943 = vadd.f32 %v941, 1.0
    %v944 = vadd.f32 %v942, 1.0
    %v945 = vmul.f32 %v929, %v943
    %v946 = vmul.f32 %v930, %v944
    %v947 = vpack.c.bf16 %v946, %v945
    %v948 = vld [vmem:[%s5] sm:$0xf]
    %v949 = vld [vmem:[%s5 + $0x4] sm:$0xf]
    %v950 = vld [vmem:[%s5 + $0x8] sm:$0xf]
    %v951 = vld [vmem:[%s5 + $0xc] sm:$0xf]
    %v952 = vld [vmem:[%s5 + $0x10] sm:$0xf]
    %v953 = vld [vmem:[%s5 + $0x14] sm:$0xf]
    %v954 = vld [vmem:[%s5 + $0x18] sm:$0xf]
    %v955 = vld [vmem:[%s5 + $0x1c] sm:$0xf]
    %v956 = vld [vmem:[%s5 + $0x20] sm:$0xf]
    %v957 = vld [vmem:[%s5 + $0x24] sm:$0xf]
    %v958 = vld [vmem:[%s5 + $0x28] sm:$0xf]
    %v959 = vld [vmem:[%s5 + $0x2c] sm:$0xf]
    %v960 = vld [vmem:[%s5 + $0x30] sm:$0xf]
    %v961 = vld [vmem:[%s5 + $0x34] sm:$0xf]
    %v962 = vld [vmem:[%s5 + $0x38] sm:$0xf]
    %v963 = vld [vmem:[%s5 + $0x3c] sm:$0xf]
    %v964 = vperm.slane %v84, 1
    %v981 = vunpack.c.l.b16 %v948
    %v982 = vunpack.c.l.b16 %v949
    %v983 = vunpack.c.l.b16 %v950
    %v984 = vunpack.c.l.b16 %v951
    %v985 = vunpack.c.l.b16 %v952
    %v986 = vunpack.c.l.b16 %v953
    %v987 = vunpack.c.l.b16 %v954
    %v988 = vunpack.c.l.b16 %v955
    %v989 = vunpack.c.l.b16 %v956
    %v990 = vunpack.c.l.b16 %v957
    %v991 = vunpack.c.l.b16 %v958
    %v992 = vunpack.c.l.b16 %v959
    %v993 = vunpack.c.l.b16 %v960
    %v994 = vunpack.c.l.b16 %v961
    %v995 = vunpack.c.l.b16 %v962
    %v996 = vunpack.c.l.b16 %v963
    %v997 = vpack.c.b16 %v982, %v981
    %v998 = vpack.c.b16 %v984, %v983
    %v999 = vpack.c.b16 %v986, %v985
    %v1000 = vpack.c.b16 %v988, %v987
    %v1001 = vpack.c.b16 %v990, %v989
    %v1002 = vpack.c.b16 %v992, %v991
    %v1003 = vpack.c.b16 %v994, %v993
    %v1004 = vpack.c.b16 %v996, %v995
    %1013 = vmatpush.bf16.msra.mxu0 %v1004
    %1014 = vmatpush.bf16.msra.mxu0 %v1003
    %1015 = vmatpush.bf16.msra.mxu0 %v1002
    %1016 = vmatpush.bf16.msra.mxu0 %v1001
    %1017 = vmatpush.bf16.msra.mxu0 %v1000
    %1018 = vmatpush.bf16.msra.mxu0 %v999
    %1019 = vmatpush.bf16.msra.mxu0 %v998
    %1020 = vmatpush.bf16.msra.mxu0 %v997
    %1021 = vmatmul.bf16.gmra.mxu0 %v947
    %v1022 = vpop.f32.mrf.mxu0
    %v1023 = vadd.f32 %v964, %v1022
    %v1024 = vpop.f32.mrf.mxu0
    %v1025 = vadd.f32 %v964, %v1024
    %1026 = vdwg.mxu0
    %v1027 = vadd.f32 %v857, %v1023
    %v1028 = vadd.f32 %v858, %v1025
    %1029 = vst.msk [vmem:[#allocation8] sm:$0xff] %vm89, %v1027
    %1030 = vst.msk [vmem:[#allocation8 + $0x8] sm:$0xff] %vm89, %v1028
    // Predicated region
    $region50: #{tpu_custom_call.1} parent=1 // pred_check
      _
    $region51: #{tpu_custom_call.1} parent=1 // pred_check_branch
      %1032 = sbr.rel (0) target = $region53
    $region52: #{tpu_custom_call.1} parent=1 // pred_region
      %1034 = vsyncadd [#allocation4], 0
      %s1035 = sshll.u32 [#allocation8], 4
      %s1036 = int_to_ptr.vmem [resolvable:$true] %s1035
      %s1037 = sshll.u32 %s9, 4
      %s1038 = int_to_ptr.hbm [resolvable:$true] %s1037
      %1043 = dma.vmem_to_hbm [thread:$0]  %s1036, 256, %s1038, [#allocation4], 128, 128, 8
    $region53: #{tpu_custom_call.1} parent=1 // pred_fallthru
      _
    // Predicated region
    $region54: #{tpu_custom_call.1} parent=1 // pred_check
      _
    $region55: #{tpu_custom_call.1} parent=1 // pred_check_branch
      %1045 = sbr.rel (0) target = $region57
    $region56: #{tpu_custom_call.1} parent=1 // pred_region
      %1047 = dma.done [#allocation4], 256
    $region57: #{tpu_custom_call.1} parent=1 // pred_fallthru
      _
    %1048 = vsyncpa [#allocation3], 1
    %1049 = vsyncpa [#allocation6], 1
    %1050 = vsyncpa [#allocation4], 1

</llo_original>
